<compile_context>
chip_gen: v6e
topology: v6e:2x2x1
jax: 0.10.0
libtpu: 0.0.40
codegen_flags: <defaults>
</compile_context>

<pallas_src>
import functools
import math

import jax
import jax.numpy as jnp
import numpy as np
from jax.experimental import pallas as pl
from jax.experimental.pallas import tpu as pltpu

# ----------------------------- configuration ------------------------------
INPUT_DIM = 16
INT_DIM = 32
OUTPUT_DIM = 8
N_BLOCKS = 4
NUM_EMB_B = 6
NUM_EMB_S = 5
NUM_EMB_W = 7
EMB_DIM_B = 8
EMB_DIM_S = 8
DS = EMB_DIM_S + EMB_DIM_B                    # 16, width of the "it_s" stream
Z_DIM = INT_DIM + DS                          # 48, fused [y | it_s] state width
HEAD_SPLITS = (OUTPUT_DIM, NUM_EMB_B, NUM_EMB_S, NUM_EMB_W)   # out, b, s, w
HEAD_TOTAL = sum(HEAD_SPLITS)                 # 26
HEAD_PAD = 128                                # lane-dense output width
N_BIAS_ROWS = 16                              # 11 rows used, padded to 16
MAX_TILE_N = 1024                             # review: raised from 256
MIN_TILE_N = 16                               # multiple of 16 (bf16 sublane pack)
TARGET_TILES = 4                              # keep >=4 tiles for v7x's 2 TCs
BATCH = 4
EPS = 1e-5                                    # BatchNorm1d default eps
F32 = jnp.float32
_INV_SQRT2 = 1.0 / math.sqrt(2.0)
_SQRT_2_OVER_PI = math.sqrt(2.0 / math.pi)


# ------------------------------ kernel body -------------------------------
def _gelu_erf(x):
    # exact (erf-based) GELU == torch.nn.GELU() default
    return 0.5 * x * (1.0 + jax.lax.erf(x * _INV_SQRT2))


def _gelu_tanh(x):
    # tanh approximation -> transcendental runs on the EUP slot (VALU relief)
    return 0.5 * x * (1.0 + jnp.tanh(_SQRT_2_OVER_PI * (x + 0.044715 * x * x * x)))


def mmd_resnet_kernel(dv_ref, e_ref, win_ref, w_ref, whead_ref, bias_ref,
                      out_ref, *, approx_gelu):
    gelu = _gelu_tanh if approx_gelu else _gelu_erf
    wdt = w_ref.dtype                         # bf16 on the fast path, f32 exact

    B = bias_ref[...]                         # (N_BIAS_ROWS, 128), f32
    b_in = B[0:1, 0:Z_DIM]                    # fused proj/emb-tail bias (1,48)
    mask_y = B[1:2, 0:Z_DIM]                  # 1.0 on lanes [0, INT_DIM)
    b_head = B[2:3, :]                        # fused head bias (1,128)

    # input layer: proj(dv) into lanes 0:32, embedding tails into lanes 32:48.
    # Two fused block-column matmuls; f32 accumulate, bias added in f32.
    z0 = (jnp.dot(dv_ref[...].astype(wdt), win_ref[0], preferred_element_type=F32)
          + jnp.dot(e_ref[...].astype(wdt), win_ref[1], preferred_element_type=F32)
          + b_in)
    y = z0 * mask_y                           # lanes 0:32 = proj(dv), rest 0
    t = gelu(z0 - y)                          # lanes 32:48 = cat(it_a,it_b), rest 0

    for l in range(N_BLOCKS):                 # static unroll
        sb = B[3 + 2 * l:4 + 2 * l, 0:Z_DIM]
        db = B[4 + 2 * l:5 + 2 * l, 0:Z_DIM]
        # s_layers[l]: acts only on lanes 32:48 (weight rows/cols 0:32 are 0)
        t = gelu(jnp.dot(t.astype(wdt), w_ref[2 * l],
                         preferred_element_type=F32) + sb)
        # dv_layers[l]: torch.cat((y, it_s), 1) == y + t (disjoint lane support)
        h = gelu(jnp.dot((y + t).astype(wdt), w_ref[2 * l + 1],
                         preferred_element_type=F32) + db)
        y = h + y if l % 2 else h             # skip connection on odd blocks

    # fused heads: [final | b | s | w | 0-pad] -> single lane-dense store
    out = jnp.dot(y.astype(wdt), whead_ref[...], preferred_element_type=F32) + b_head
    out_ref[...] = out.astype(out_ref.dtype)


# ------------------------- host-side param folding -------------------------
def _fold_bn(w, b, bn):
    """Fold eval-mode BatchNorm1d into the preceding Linear (x @ w + b)."""
    scale = bn[0] * jax.lax.rsqrt(bn[3] + EPS)         # gamma * rsqrt(var+eps)
    return w * scale[None, :], (b - bn[2:3]) * scale[None, :] + bn[1:2]


def pack_params(p, compute_dtype):
    """Fold every BN into its Linear and pack all weights into 4 slabs."""
    wp, bp = _fold_bn(p["Wp"], p["bp"], p["bnp"])          # (16,32), (1,32)
    wse, bse = _fold_bn(p["Wse"], p["bse"], p["bnse"])     # (8,8),  (1,8)
    wbe, bbe = _fold_bn(p["Wbe"], p["bbe"], p["bnbe"])     # (8,8),  (1,8)

    # w_in[0]: dv (16 lanes) -> lanes 0:32 ; w_in[1]: [es|eb] -> lanes 32:48
    w_in = jnp.zeros((2, DS, Z_DIM), F32)
    w_in = w_in.at[0, 0:INPUT_DIM, 0:INT_DIM].set(wp)
    w_in = w_in.at[1, 0:EMB_DIM_S, INT_DIM:INT_DIM + EMB_DIM_S].set(wse)
    w_in = w_in.at[1, EMB_DIM_S:DS, INT_DIM + EMB_DIM_S:Z_DIM].set(wbe)

    bias = jnp.zeros((N_BIAS_ROWS, HEAD_PAD), F32)
    b_in = jnp.concatenate([bp, bse, bbe], axis=1)[0]      # (48,)
    bias = bias.at[0, 0:Z_DIM].set(b_in)
    bias = bias.at[1, 0:INT_DIM].set(1.0)                  # mask_y row

    W = jnp.zeros((2 * N_BLOCKS, Z_DIM, Z_DIM), F32)
    for l in range(N_BLOCKS):
        sw, sb = _fold_bn(p["sW"][l], p["sb"][l], p["sbn"][l])   # (16,16),(1,16)
        dw, db = _fold_bn(p["dW"][l], p["db"][l], p["dbn"][l])   # (48,32),(1,32)
        W = W.at[2 * l, INT_DIM:Z_DIM, INT_DIM:Z_DIM].set(sw)
        W = W.at[2 * l + 1, :, 0:INT_DIM].set(dw)
        bias = bias.at[3 + 2 * l, INT_DIM:Z_DIM].set(sb[0])
        bias = bias.at[4 + 2 * l, 0:INT_DIM].set(db[0])

    whead = jnp.zeros((Z_DIM, HEAD_PAD), F32)
    whead = whead.at[0:INT_DIM, 0:HEAD_TOTAL].set(
        jnp.concatenate([p["Wf"], p["Wbh"], p["Wsh"], p["Wwh"]], axis=1))
    bhead = jnp.concatenate([p["bf"], p["bbh"], p["bsh"], p["bwh"]], axis=1)[0]
    bias = bias.at[2, 0:HEAD_TOTAL].set(bhead)

    cdt = compute_dtype
    return w_in.astype(cdt), W.astype(cdt), whead.astype(cdt), bias


# ------------------------------ wrapper ------------------------------------
def _round_up(x, m):
    return ((x + m - 1) // m) * m


def _choose_tile_n(n):
    """Large tiles (amortize per-step overhead) but keep >= TARGET_TILES grid
    steps when N is big enough so both v7x TensorCores get work."""
    n16 = _round_up(max(n, 1), MIN_TILE_N)
    tile = _round_up(pl.cdiv(n16, TARGET_TILES), MIN_TILE_N)
    return int(max(MIN_TILE_N, min(MAX_TILE_N, tile)))


def mmd_resnet_forward(params, dv, iv_s, iv_b, iv_w, *,
                       compute_dtype=jnp.bfloat16):
    del iv_w  # the 'w' head is applied to y; iv_w is unused (matches PyTorch)
    w_in, W, whead, bias = pack_params(params, compute_dtype)
    exact = compute_dtype == jnp.float32
    approx_gelu = not exact                    # tanh-GELU only on the fast path

    # embedding row gather (data-dependent indexing) = host-side glue; the two
    # gathered streams are fused into one (N,16) array (no (N,48) round trip).
    es = params["emb_s_table"][iv_s]                        # (N, EMB_DIM_S)
    eb = params["emb_b_table"][iv_b]                        # (N, EMB_DIM_B)
    e = jnp.concatenate([es, eb], axis=1).astype(F32)       # (N, 16)
    dv = dv.astype(F32)                                     # (N, 16)

    n = dv.shape[0]
    tile_n = _choose_tile_n(n)
    n_pad = _round_up(n, tile_n)
    if n_pad != n:
        pad = ((0, n_pad - n), (0, 0))
        dv = jnp.pad(dv, pad)
        e = jnp.pad(e, pad)
    grid = (n_pad // tile_n,)

    out_dtype = jnp.float32 if exact else compute_dtype     # bf16 store on fast path
    kernel = functools.partial(mmd_resnet_kernel, approx_gelu=approx_gelu)

    out = pl.pallas_call(
        kernel,
        out_shape=jax.ShapeDtypeStruct((n_pad, HEAD_PAD), out_dtype),
        grid_spec=pltpu.PrefetchScalarGridSpec(
            num_scalar_prefetch=0,
            grid=grid,
            in_specs=[
                pl.BlockSpec((tile_n, INPUT_DIM), lambda i: (i, 0)),
                pl.BlockSpec((tile_n, DS), lambda i: (i, 0)),
                # parameter slabs: constant index_map -> DMA'd once, VMEM resident
                pl.BlockSpec((2, DS, Z_DIM), lambda i: (0, 0, 0)),
                pl.BlockSpec((2 * N_BLOCKS, Z_DIM, Z_DIM), lambda i: (0, 0, 0)),
                pl.BlockSpec((Z_DIM, HEAD_PAD), lambda i: (0, 0)),
                pl.BlockSpec((N_BIAS_ROWS, HEAD_PAD), lambda i: (0, 0)),
            ],
            out_specs=pl.BlockSpec((tile_n, HEAD_PAD), lambda i: (i, 0)),
        ),
        compiler_params=pltpu.CompilerParams(
            dimension_semantics=("parallel",),
            vmem_limit_bytes=32 * 1024 * 1024),
    )(dv, e, w_in, W, whead, bias)

    out = out.astype(F32)                                   # stable f32 interface
    heads, off = [], 0
    for width in HEAD_SPLITS:
        heads.append(out[:n, off:off + width])
        off += width
    return tuple(heads)                                     # (out, b, s, w)


# ------------------------- pure-JAX reference ------------------------------
def reference_forward(params, dv, iv_s, iv_b, iv_w):
    del iv_w

    def bn(x, p):
        return (x - p[2:3]) * jax.lax.rsqrt(p[3:4] + EPS) * p[0:1] + p[1:2]

    gelu = _gelu_erf

    with jax.default_matmul_precision("float32"):
        y = bn(dv @ params["Wp"] + params["bp"], params["bnp"])
        it_a = gelu(bn(params["emb_s_table"][iv_s] @ params["Wse"] + params["bse"],
                       params["bnse"]))
        it_b = gelu(bn(params["emb_b_table"][iv_b] @ params["Wbe"] + params["bbe"],
                       params["bnbe"]))
        it_s = jnp.concatenate([it_a, it_b], axis=1)
        for l in range(N_BLOCKS):
            it_s = gelu(bn(it_s @ params["sW"][l] + params["sb"][l], params["sbn"][l]))
            cat_y = jnp.concatenate([y, it_s], axis=1)
            h = gelu(bn(cat_y @ params["dW"][l] + params["db"][l], params["dbn"][l]))
            y = h + y if l % 2 else h
        out = y @ params["Wf"] + params["bf"]
        b = y @ params["Wbh"] + params["bbh"]
        s = y @ params["Wsh"] + params["bsh"]
        w = y @ params["Wwh"] + params["bwh"]
    return out, b, s, w


# --------------------------- parameter building ----------------------------
class _KeyGen:
    def __init__(self, seed=0):
        self._key = jax.random.PRNGKey(seed)
        self._i = 0

    def __call__(self):
        self._i += 1
        return jax.random.fold_in(self._key, self._i)


def build_params():
    kg = _KeyGen(0)

    def lin(fan_in, fan_out):
        w = jax.random.normal(kg(), (fan_in, fan_out), F32) / math.sqrt(fan_in)
        b = 0.1 * jax.random.normal(kg(), (1, fan_out), F32)
        return w, b

    def bn_params(d):
        g = 1.0 + 0.1 * jax.random.normal(kg(), (1, d), F32)
        b = 0.1 * jax.random.normal(kg(), (1, d), F32)
        m = 0.1 * jax.random.normal(kg(), (1, d), F32)
        v = 0.5 + jnp.abs(jax.random.normal(kg(), (1, d), F32))
        return jnp.concatenate([g, b, m, v], axis=0)          # (4, d)

    p = {}
    p["emb_s_table"] = jax.random.normal(kg(), (NUM_EMB_S, EMB_DIM_S), F32)
    p["emb_b_table"] = jax.random.normal(kg(), (NUM_EMB_B, EMB_DIM_B), F32)
    p["Wse"], p["bse"] = lin(EMB_DIM_S, EMB_DIM_S)
    p["bnse"] = bn_params(EMB_DIM_S)
    p["Wbe"], p["bbe"] = lin(EMB_DIM_B, EMB_DIM_B)
    p["bnbe"] = bn_params(EMB_DIM_B)
    p["Wp"], p["bp"] = lin(INPUT_DIM, INT_DIM)
    p["bnp"] = bn_params(INT_DIM)

    sW, sb, sbn, dW, db, dbn = [], [], [], [], [], []
    for _ in range(N_BLOCKS):
        w, b = lin(DS, DS)
        sW.append(w); sb.append(b); sbn.append(bn_params(DS))
        w, b = lin(INT_DIM + DS, INT_DIM)
        dW.append(w); db.append(b); dbn.append(bn_params(INT_DIM))
    p["sW"] = jnp.stack(sW)                    # (L, DS, DS)
    p["sb"] = jnp.stack(sb)                    # (L, 1, DS)
    p["sbn"] = jnp.stack(sbn)                  # (L, 4, DS)
    p["dW"] = jnp.stack(dW)                    # (L, INT_DIM+DS, INT_DIM)
    p["db"] = jnp.stack(db)                    # (L, 1, INT_DIM)
    p["dbn"] = jnp.stack(dbn)                  # (L, 4, INT_DIM)

    p["Wf"], p["bf"] = lin(INT_DIM, OUTPUT_DIM)
    p["Wbh"], p["bbh"] = lin(INT_DIM, NUM_EMB_B)
    p["Wsh"], p["bsh"] = lin(INT_DIM, NUM_EMB_S)
    p["Wwh"], p["bwh"] = lin(INT_DIM, NUM_EMB_W)
    return p


# --------------------------------- main -------------------------------------
if __name__ == "__main__":
    params = build_params()

    key = jax.random.PRNGKey(0)
    k_dv, k_s, k_b, k_w = jax.random.split(key, 4)
    dv = jax.random.normal(k_dv, (BATCH, INPUT_DIM), F32)
    iv_s = jax.random.randint(k_s, (BATCH,), 0, NUM_EMB_S)
    iv_b = jax.random.randint(k_b, (BATCH,), 0, NUM_EMB_B)
    iv_w = jax.random.randint(k_w, (BATCH,), 0, NUM_EMB_W)

    refs = reference_forward(params, dv, iv_s, iv_b, iv_w)

    # 1) Exact path (f32 operands, erf GELU): tight correctness gate.
    outs_exact = mmd_resnet_forward(params, dv, iv_s, iv_b, iv_w,
                                    compute_dtype=jnp.float32)
    outs_exact = jax.block_until_ready(outs_exact)
    for got, want in zip(outs_exact, refs):
        np.testing.assert_allclose(np.asarray(got), np.asarray(want),
                                   atol=1e-2, rtol=1e-2)

    # 2) Fast path (default): bf16 MXU operands + f32 accumulate, tanh-GELU,
    #    bf16 output store.  Loose sanity bound only -- the deviation here is
    #    precision (bf16 quantization through a 10-matmul chain + tanh approx),
    #    structural correctness is already proven by the exact path above.
    outs_fast = mmd_resnet_forward(params, dv, iv_s, iv_b, iv_w)
    outs_fast = jax.block_until_ready(outs_fast)
    for got, want in zip(outs_fast, refs):
        np.testing.assert_allclose(np.asarray(got), np.asarray(want),
                                   atol=1e-1, rtol=1e-1)

    print("KERNEL_OK")
</pallas_src>

<mosaic_0001>
module attributes {stable_mosaic.version = 11 : i64} {
  func.func @mmd_resnet_kernel(%arg0: i32, %arg1: memref<16x16xf32, #tpu.memory_space<vmem>>, %arg2: memref<16x16xf32, #tpu.memory_space<vmem>>, %arg3: memref<2x16x48xf32, #tpu.memory_space<vmem>>, %arg4: memref<8x48x48xf32, #tpu.memory_space<vmem>>, %arg5: memref<48x128xf32, #tpu.memory_space<vmem>>, %arg6: memref<16x128xf32, #tpu.memory_space<vmem>>, %arg7: memref<16x128xf32, #tpu.memory_space<vmem>>) attributes {dimension_semantics = [#tpu.dimension_semantics<parallel>], iteration_bounds = array<i64: 1>, scalar_prefetch = 0 : i64, scratch_operands = 0 : i64, tpu.core_type = #tpu.core_type<tc>, window_params = [{transform_indices = @transform_0, window_bounds = array<i64: 16, 16>}, {transform_indices = @transform_1, window_bounds = array<i64: 16, 16>}, {pipeline_mode = #tpu.pipeline_mode<synchronous>, transform_indices = @transform_2, window_bounds = array<i64: 2, 16, 48>}, {pipeline_mode = #tpu.pipeline_mode<synchronous>, transform_indices = @transform_3, window_bounds = array<i64: 8, 48, 48>}, {pipeline_mode = #tpu.pipeline_mode<synchronous>, transform_indices = @transform_4, window_bounds = array<i64: 48, 128>}, {pipeline_mode = #tpu.pipeline_mode<synchronous>, transform_indices = @transform_5, window_bounds = array<i64: 16, 128>}, {transform_indices = @transform_6, window_bounds = array<i64: 16, 128>}]} {
    %c0 = arith.constant 0 : index
    %c0_0 = arith.constant 0 : index
    %0 = vector.load %arg6[%c0, %c0_0] : memref<16x128xf32, #tpu.memory_space<vmem>>, vector<16x128xf32>
    %1 = vector.extract_strided_slice %0 {offsets = [0, 0], sizes = [1, 48], strides = [1, 1]} : vector<16x128xf32> to vector<1x48xf32>
    %2 = vector.extract_strided_slice %0 {offsets = [1, 0], sizes = [1, 48], strides = [1, 1]} : vector<16x128xf32> to vector<1x48xf32>
    %3 = vector.extract_strided_slice %0 {offsets = [2, 0], sizes = [1, 128], strides = [1, 1]} : vector<16x128xf32> to vector<1x128xf32>
    %c0_1 = arith.constant 0 : index
    %c0_2 = arith.constant 0 : index
    %4 = vector.load %arg1[%c0_1, %c0_2] : memref<16x16xf32, #tpu.memory_space<vmem>>, vector<16x16xf32>
    %c0_3 = arith.constant 0 : index
    %c0_4 = arith.constant 0 : index
    %c0_5 = arith.constant 0 : index
    %5 = vector.load %arg3[%c0_3, %c0_4, %c0_5] : memref<2x16x48xf32, #tpu.memory_space<vmem>>, vector<1x16x48xf32>
    %6 = vector.shape_cast %5 : vector<1x16x48xf32> to vector<16x48xf32>
    %cst = arith.constant dense<0.000000e+00> : vector<16x48xf32>
    %7 = tpu.matmul %4, %6, %cst {dimension_numbers = #tpu.dot_dimension_numbers<[1], [0], [0], [1], [0, 0, 1, 1], [], []>} : vector<16x16xf32>, vector<16x48xf32>, vector<16x48xf32> -> vector<16x48xf32>
    %c0_6 = arith.constant 0 : index
    %c0_7 = arith.constant 0 : index
    %8 = vector.load %arg2[%c0_6, %c0_7] : memref<16x16xf32, #tpu.memory_space<vmem>>, vector<16x16xf32>
    %c1 = arith.constant 1 : index
    %c0_8 = arith.constant 0 : index
    %c0_9 = arith.constant 0 : index
    %9 = vector.load %arg3[%c1, %c0_8, %c0_9] : memref<2x16x48xf32, #tpu.memory_space<vmem>>, vector<1x16x48xf32>
    %10 = vector.shape_cast %9 : vector<1x16x48xf32> to vector<16x48xf32>
    %cst_10 = arith.constant dense<0.000000e+00> : vector<16x48xf32>
    %11 = tpu.matmul %8, %10, %cst_10 {dimension_numbers = #tpu.dot_dimension_numbers<[1], [0], [0], [1], [0, 0, 1, 1], [], []>} : vector<16x16xf32>, vector<16x48xf32>, vector<16x48xf32> -> vector<16x48xf32>
    %12 = arith.addf %7, %11 : vector<16x48xf32>
    %13 = vector.broadcast %1 : vector<1x48xf32> to vector<16x48xf32>
    %14 = arith.addf %12, %13 : vector<16x48xf32>
    %15 = vector.broadcast %2 : vector<1x48xf32> to vector<16x48xf32>
    %16 = arith.mulf %14, %15 : vector<16x48xf32>
    %17 = arith.subf %14, %16 : vector<16x48xf32>
    %cst_11 = arith.constant 5.000000e-01 : f32
    %18 = vector.broadcast %cst_11 : f32 to vector<16x48xf32>
    %19 = arith.mulf %18, %17 : vector<16x48xf32>
    %cst_12 = arith.constant 0.707106769 : f32
    %20 = vector.broadcast %cst_12 : f32 to vector<16x48xf32>
    %21 = arith.mulf %17, %20 : vector<16x48xf32>
    %22 = math.erf %21 : vector<16x48xf32>
    %cst_13 = arith.constant 1.000000e+00 : f32
    %23 = vector.broadcast %cst_13 : f32 to vector<16x48xf32>
    %24 = arith.addf %23, %22 : vector<16x48xf32>
    %25 = arith.mulf %19, %24 : vector<16x48xf32>
    %26 = vector.extract_strided_slice %0 {offsets = [3, 0], sizes = [1, 48], strides = [1, 1]} : vector<16x128xf32> to vector<1x48xf32>
    %27 = vector.extract_strided_slice %0 {offsets = [4, 0], sizes = [1, 48], strides = [1, 1]} : vector<16x128xf32> to vector<1x48xf32>
    %c0_14 = arith.constant 0 : index
    %c0_15 = arith.constant 0 : index
    %c0_16 = arith.constant 0 : index
    %28 = vector.load %arg4[%c0_14, %c0_15, %c0_16] : memref<8x48x48xf32, #tpu.memory_space<vmem>>, vector<1x48x48xf32>
    %29 = vector.shape_cast %28 : vector<1x48x48xf32> to vector<48x48xf32>
    %cst_17 = arith.constant dense<0.000000e+00> : vector<16x48xf32>
    %30 = tpu.matmul %25, %29, %cst_17 {dimension_numbers = #tpu.dot_dimension_numbers<[1], [0], [0], [1], [0, 0, 1, 1], [], []>} : vector<16x48xf32>, vector<48x48xf32>, vector<16x48xf32> -> vector<16x48xf32>
    %31 = vector.broadcast %26 : vector<1x48xf32> to vector<16x48xf32>
    %32 = arith.addf %30, %31 : vector<16x48xf32>
    %cst_18 = arith.constant 5.000000e-01 : f32
    %33 = vector.broadcast %cst_18 : f32 to vector<16x48xf32>
    %34 = arith.mulf %33, %32 : vector<16x48xf32>
    %cst_19 = arith.constant 0.707106769 : f32
    %35 = vector.broadcast %cst_19 : f32 to vector<16x48xf32>
    %36 = arith.mulf %32, %35 : vector<16x48xf32>
    %37 = math.erf %36 : vector<16x48xf32>
    %cst_20 = arith.constant 1.000000e+00 : f32
    %38 = vector.broadcast %cst_20 : f32 to vector<16x48xf32>
    %39 = arith.addf %38, %37 : vector<16x48xf32>
    %40 = arith.mulf %34, %39 : vector<16x48xf32>
    %41 = arith.addf %16, %40 : vector<16x48xf32>
    %c1_21 = arith.constant 1 : index
    %c0_22 = arith.constant 0 : index
    %c0_23 = arith.constant 0 : index
    %42 = vector.load %arg4[%c1_21, %c0_22, %c0_23] : memref<8x48x48xf32, #tpu.memory_space<vmem>>, vector<1x48x48xf32>
    %43 = vector.shape_cast %42 : vector<1x48x48xf32> to vector<48x48xf32>
    %cst_24 = arith.constant dense<0.000000e+00> : vector<16x48xf32>
    %44 = tpu.matmul %41, %43, %cst_24 {dimension_numbers = #tpu.dot_dimension_numbers<[1], [0], [0], [1], [0, 0, 1, 1], [], []>} : vector<16x48xf32>, vector<48x48xf32>, vector<16x48xf32> -> vector<16x48xf32>
    %45 = vector.broadcast %27 : vector<1x48xf32> to vector<16x48xf32>
    %46 = arith.addf %44, %45 : vector<16x48xf32>
    %cst_25 = arith.constant 5.000000e-01 : f32
    %47 = vector.broadcast %cst_25 : f32 to vector<16x48xf32>
    %48 = arith.mulf %47, %46 : vector<16x48xf32>
    %cst_26 = arith.constant 0.707106769 : f32
    %49 = vector.broadcast %cst_26 : f32 to vector<16x48xf32>
    %50 = arith.mulf %46, %49 : vector<16x48xf32>
    %51 = math.erf %50 : vector<16x48xf32>
    %cst_27 = arith.constant 1.000000e+00 : f32
    %52 = vector.broadcast %cst_27 : f32 to vector<16x48xf32>
    %53 = arith.addf %52, %51 : vector<16x48xf32>
    %54 = arith.mulf %48, %53 : vector<16x48xf32>
    %55 = vector.extract_strided_slice %0 {offsets = [5, 0], sizes = [1, 48], strides = [1, 1]} : vector<16x128xf32> to vector<1x48xf32>
    %56 = vector.extract_strided_slice %0 {offsets = [6, 0], sizes = [1, 48], strides = [1, 1]} : vector<16x128xf32> to vector<1x48xf32>
    %c2 = arith.constant 2 : index
    %c0_28 = arith.constant 0 : index
    %c0_29 = arith.constant 0 : index
    %57 = vector.load %arg4[%c2, %c0_28, %c0_29] : memref<8x48x48xf32, #tpu.memory_space<vmem>>, vector<1x48x48xf32>
    %58 = vector.shape_cast %57 : vector<1x48x48xf32> to vector<48x48xf32>
    %cst_30 = arith.constant dense<0.000000e+00> : vector<16x48xf32>
    %59 = tpu.matmul %40, %58, %cst_30 {dimension_numbers = #tpu.dot_dimension_numbers<[1], [0], [0], [1], [0, 0, 1, 1], [], []>} : vector<16x48xf32>, vector<48x48xf32>, vector<16x48xf32> -> vector<16x48xf32>
    %60 = vector.broadcast %55 : vector<1x48xf32> to vector<16x48xf32>
    %61 = arith.addf %59, %60 : vector<16x48xf32>
    %cst_31 = arith.constant 5.000000e-01 : f32
    %62 = vector.broadcast %cst_31 : f32 to vector<16x48xf32>
    %63 = arith.mulf %62, %61 : vector<16x48xf32>
    %cst_32 = arith.constant 0.707106769 : f32
    %64 = vector.broadcast %cst_32 : f32 to vector<16x48xf32>
    %65 = arith.mulf %61, %64 : vector<16x48xf32>
    %66 = math.erf %65 : vector<16x48xf32>
    %cst_33 = arith.constant 1.000000e+00 : f32
    %67 = vector.broadcast %cst_33 : f32 to vector<16x48xf32>
    %68 = arith.addf %67, %66 : vector<16x48xf32>
    %69 = arith.mulf %63, %68 : vector<16x48xf32>
    %70 = arith.addf %54, %69 : vector<16x48xf32>
    %c3 = arith.constant 3 : index
    %c0_34 = arith.constant 0 : index
    %c0_35 = arith.constant 0 : index
    %71 = vector.load %arg4[%c3, %c0_34, %c0_35] : memref<8x48x48xf32, #tpu.memory_space<vmem>>, vector<1x48x48xf32>
    %72 = vector.shape_cast %71 : vector<1x48x48xf32> to vector<48x48xf32>
    %cst_36 = arith.constant dense<0.000000e+00> : vector<16x48xf32>
    %73 = tpu.matmul %70, %72, %cst_36 {dimension_numbers = #tpu.dot_dimension_numbers<[1], [0], [0], [1], [0, 0, 1, 1], [], []>} : vector<16x48xf32>, vector<48x48xf32>, vector<16x48xf32> -> vector<16x48xf32>
    %74 = vector.broadcast %56 : vector<1x48xf32> to vector<16x48xf32>
    %75 = arith.addf %73, %74 : vector<16x48xf32>
    %cst_37 = arith.constant 5.000000e-01 : f32
    %76 = vector.broadcast %cst_37 : f32 to vector<16x48xf32>
    %77 = arith.mulf %76, %75 : vector<16x48xf32>
    %cst_38 = arith.constant 0.707106769 : f32
    %78 = vector.broadcast %cst_38 : f32 to vector<16x48xf32>
    %79 = arith.mulf %75, %78 : vector<16x48xf32>
    %80 = math.erf %79 : vector<16x48xf32>
    %cst_39 = arith.constant 1.000000e+00 : f32
    %81 = vector.broadcast %cst_39 : f32 to vector<16x48xf32>
    %82 = arith.addf %81, %80 : vector<16x48xf32>
    %83 = arith.mulf %77, %82 : vector<16x48xf32>
    %84 = arith.addf %83, %54 : vector<16x48xf32>
    %85 = vector.extract_strided_slice %0 {offsets = [7, 0], sizes = [1, 48], strides = [1, 1]} : vector<16x128xf32> to vector<1x48xf32>
    %86 = vector.extract_strided_slice %0 {offsets = [8, 0], sizes = [1, 48], strides = [1, 1]} : vector<16x128xf32> to vector<1x48xf32>
    %c4 = arith.constant 4 : index
    %c0_40 = arith.constant 0 : index
    %c0_41 = arith.constant 0 : index
    %87 = vector.load %arg4[%c4, %c0_40, %c0_41] : memref<8x48x48xf32, #tpu.memory_space<vmem>>, vector<1x48x48xf32>
    %88 = vector.shape_cast %87 : vector<1x48x48xf32> to vector<48x48xf32>
    %cst_42 = arith.constant dense<0.000000e+00> : vector<16x48xf32>
    %89 = tpu.matmul %69, %88, %cst_42 {dimension_numbers = #tpu.dot_dimension_numbers<[1], [0], [0], [1], [0, 0, 1, 1], [], []>} : vector<16x48xf32>, vector<48x48xf32>, vector<16x48xf32> -> vector<16x48xf32>
    %90 = vector.broadcast %85 : vector<1x48xf32> to vector<16x48xf32>
    %91 = arith.addf %89, %90 : vector<16x48xf32>
    %cst_43 = arith.constant 5.000000e-01 : f32
    %92 = vector.broadcast %cst_43 : f32 to vector<16x48xf32>
    %93 = arith.mulf %92, %91 : vector<16x48xf32>
    %cst_44 = arith.constant 0.707106769 : f32
    %94 = vector.broadcast %cst_44 : f32 to vector<16x48xf32>
    %95 = arith.mulf %91, %94 : vector<16x48xf32>
    %96 = math.erf %95 : vector<16x48xf32>
    %cst_45 = arith.constant 1.000000e+00 : f32
    %97 = vector.broadcast %cst_45 : f32 to vector<16x48xf32>
    %98 = arith.addf %97, %96 : vector<16x48xf32>
    %99 = arith.mulf %93, %98 : vector<16x48xf32>
    %100 = arith.addf %84, %99 : vector<16x48xf32>
    %c5 = arith.constant 5 : index
    %c0_46 = arith.constant 0 : index
    %c0_47 = arith.constant 0 : index
    %101 = vector.load %arg4[%c5, %c0_46, %c0_47] : memref<8x48x48xf32, #tpu.memory_space<vmem>>, vector<1x48x48xf32>
    %102 = vector.shape_cast %101 : vector<1x48x48xf32> to vector<48x48xf32>
    %cst_48 = arith.constant dense<0.000000e+00> : vector<16x48xf32>
    %103 = tpu.matmul %100, %102, %cst_48 {dimension_numbers = #tpu.dot_dimension_numbers<[1], [0], [0], [1], [0, 0, 1, 1], [], []>} : vector<16x48xf32>, vector<48x48xf32>, vector<16x48xf32> -> vector<16x48xf32>
    %104 = vector.broadcast %86 : vector<1x48xf32> to vector<16x48xf32>
    %105 = arith.addf %103, %104 : vector<16x48xf32>
    %cst_49 = arith.constant 5.000000e-01 : f32
    %106 = vector.broadcast %cst_49 : f32 to vector<16x48xf32>
    %107 = arith.mulf %106, %105 : vector<16x48xf32>
    %cst_50 = arith.constant 0.707106769 : f32
    %108 = vector.broadcast %cst_50 : f32 to vector<16x48xf32>
    %109 = arith.mulf %105, %108 : vector<16x48xf32>
    %110 = math.erf %109 : vector<16x48xf32>
    %cst_51 = arith.constant 1.000000e+00 : f32
    %111 = vector.broadcast %cst_51 : f32 to vector<16x48xf32>
    %112 = arith.addf %111, %110 : vector<16x48xf32>
    %113 = arith.mulf %107, %112 : vector<16x48xf32>
    %114 = vector.extract_strided_slice %0 {offsets = [9, 0], sizes = [1, 48], strides = [1, 1]} : vector<16x128xf32> to vector<1x48xf32>
    %115 = vector.extract_strided_slice %0 {offsets = [10, 0], sizes = [1, 48], strides = [1, 1]} : vector<16x128xf32> to vector<1x48xf32>
    %c6 = arith.constant 6 : index
    %c0_52 = arith.constant 0 : index
    %c0_53 = arith.constant 0 : index
    %116 = vector.load %arg4[%c6, %c0_52, %c0_53] : memref<8x48x48xf32, #tpu.memory_space<vmem>>, vector<1x48x48xf32>
    %117 = vector.shape_cast %116 : vector<1x48x48xf32> to vector<48x48xf32>
    %cst_54 = arith.constant dense<0.000000e+00> : vector<16x48xf32>
    %118 = tpu.matmul %99, %117, %cst_54 {dimension_numbers = #tpu.dot_dimension_numbers<[1], [0], [0], [1], [0, 0, 1, 1], [], []>} : vector<16x48xf32>, vector<48x48xf32>, vector<16x48xf32> -> vector<16x48xf32>
    %119 = vector.broadcast %114 : vector<1x48xf32> to vector<16x48xf32>
    %120 = arith.addf %118, %119 : vector<16x48xf32>
    %cst_55 = arith.constant 5.000000e-01 : f32
    %121 = vector.broadcast %cst_55 : f32 to vector<16x48xf32>
    %122 = arith.mulf %121, %120 : vector<16x48xf32>
    %cst_56 = arith.constant 0.707106769 : f32
    %123 = vector.broadcast %cst_56 : f32 to vector<16x48xf32>
    %124 = arith.mulf %120, %123 : vector<16x48xf32>
    %125 = math.erf %124 : vector<16x48xf32>
    %cst_57 = arith.constant 1.000000e+00 : f32
    %126 = vector.broadcast %cst_57 : f32 to vector<16x48xf32>
    %127 = arith.addf %126, %125 : vector<16x48xf32>
    %128 = arith.mulf %122, %127 : vector<16x48xf32>
    %129 = arith.addf %113, %128 : vector<16x48xf32>
    %c7 = arith.constant 7 : index
    %c0_58 = arith.constant 0 : index
    %c0_59 = arith.constant 0 : index
    %130 = vector.load %arg4[%c7, %c0_58, %c0_59] : memref<8x48x48xf32, #tpu.memory_space<vmem>>, vector<1x48x48xf32>
    %131 = vector.shape_cast %130 : vector<1x48x48xf32> to vector<48x48xf32>
    %cst_60 = arith.constant dense<0.000000e+00> : vector<16x48xf32>
    %132 = tpu.matmul %129, %131, %cst_60 {dimension_numbers = #tpu.dot_dimension_numbers<[1], [0], [0], [1], [0, 0, 1, 1], [], []>} : vector<16x48xf32>, vector<48x48xf32>, vector<16x48xf32> -> vector<16x48xf32>
    %133 = vector.broadcast %115 : vector<1x48xf32> to vector<16x48xf32>
    %134 = arith.addf %132, %133 : vector<16x48xf32>
    %cst_61 = arith.constant 5.000000e-01 : f32
    %135 = vector.broadcast %cst_61 : f32 to vector<16x48xf32>
    %136 = arith.mulf %135, %134 : vector<16x48xf32>
    %cst_62 = arith.constant 0.707106769 : f32
    %137 = vector.broadcast %cst_62 : f32 to vector<16x48xf32>
    %138 = arith.mulf %134, %137 : vector<16x48xf32>
    %139 = math.erf %138 : vector<16x48xf32>
    %cst_63 = arith.constant 1.000000e+00 : f32
    %140 = vector.broadcast %cst_63 : f32 to vector<16x48xf32>
    %141 = arith.addf %140, %139 : vector<16x48xf32>
    %142 = arith.mulf %136, %141 : vector<16x48xf32>
    %143 = arith.addf %142, %113 : vector<16x48xf32>
    %c0_64 = arith.constant 0 : index
    %c0_65 = arith.constant 0 : index
    %144 = vector.load %arg5[%c0_64, %c0_65] : memref<48x128xf32, #tpu.memory_space<vmem>>, vector<48x128xf32>
    %cst_66 = arith.constant dense<0.000000e+00> : vector<16x128xf32>
    %145 = tpu.matmul %143, %144, %cst_66 {dimension_numbers = #tpu.dot_dimension_numbers<[1], [0], [0], [1], [0, 0, 1, 1], [], []>} : vector<16x48xf32>, vector<48x128xf32>, vector<16x128xf32> -> vector<16x128xf32>
    %146 = vector.broadcast %3 : vector<1x128xf32> to vector<16x128xf32>
    %147 = arith.addf %145, %146 : vector<16x128xf32>
    %c0_67 = arith.constant 0 : index
    %c0_68 = arith.constant 0 : index
    %148 = vector.load %arg7[%c0_67, %c0_68] : memref<16x128xf32, #tpu.memory_space<vmem>>, vector<16x128xf32>
    tpu.vector_store %arg7[%c0_67, %c0_68], %147 {strides = array<i32>} : memref<16x128xf32, #tpu.memory_space<vmem>>, vector<16x128xf32>,
    return
  }
  func.func @transform_0(%arg0: i32) -> (i32, i32) {
    %c0_i32 = arith.constant 0 : i32
    %c0_i32_0 = arith.constant 0 : i32
    return %arg0, %c0_i32 : i32, i32
  }
  func.func @transform_1(%arg0: i32) -> (i32, i32) {
    %c0_i32 = arith.constant 0 : i32
    %c0_i32_0 = arith.constant 0 : i32
    return %arg0, %c0_i32 : i32, i32
  }
  func.func @transform_2(%arg0: i32) -> (i32, i32, i32) {
    %c0_i32 = arith.constant 0 : i32
    %c0_i32_0 = arith.constant 0 : i32
    %c0_i32_1 = arith.constant 0 : i32
    %c0_i32_2 = arith.constant 0 : i32
    return %c0_i32, %c0_i32_0, %c0_i32_1 : i32, i32, i32
  }
  func.func @transform_3(%arg0: i32) -> (i32, i32, i32) {
    %c0_i32 = arith.constant 0 : i32
    %c0_i32_0 = arith.constant 0 : i32
    %c0_i32_1 = arith.constant 0 : i32
    %c0_i32_2 = arith.constant 0 : i32
    return %c0_i32, %c0_i32_0, %c0_i32_1 : i32, i32, i32
  }
  func.func @transform_4(%arg0: i32) -> (i32, i32) {
    %c0_i32 = arith.constant 0 : i32
    %c0_i32_0 = arith.constant 0 : i32
    %c0_i32_1 = arith.constant 0 : i32
    return %c0_i32, %c0_i32_0 : i32, i32
  }
  func.func @transform_5(%arg0: i32) -> (i32, i32) {
    %c0_i32 = arith.constant 0 : i32
    %c0_i32_0 = arith.constant 0 : i32
    %c0_i32_1 = arith.constant 0 : i32
    return %c0_i32, %c0_i32_0 : i32, i32
  }
  func.func @transform_6(%arg0: i32) -> (i32, i32) {
    %c0_i32 = arith.constant 0 : i32
    %c0_i32_0 = arith.constant 0 : i32
    return %arg0, %c0_i32 : i32, i32
  }
}

</mosaic_0001>

<llo_original>
// kernel: tpu_custom_call.1
$region0: #{tpu_custom_call.1}
  #allocation0 [shape = 'u32[]', space=smem, size = 0x4, offset = 0x4, fixed_abs, tag = 'smem constant byte address 0x4 - core index']
  #allocation1 [shape = 'u32[144,128]{1,0:T(1,128)}', space=vmem, size = 0x12000, scoped, tag = 'internal scratch']
  %s0 = inlined_call_operand.hbm [shape: f32[16,16], index: 0, kind: input, shape index: {}]
  %s1 = inlined_call_operand.hbm [shape: f32[16,16], index: 1, kind: input, shape index: {}]
  %s2 = inlined_call_operand.hbm [shape: f32[2,16,48], index: 2, kind: input, shape index: {}]
  %s3 = inlined_call_operand.hbm [shape: f32[8,48,48], index: 3, kind: input, shape index: {}]
  %s4 = inlined_call_operand.hbm [shape: f32[48,128], index: 4, kind: input, shape index: {}]
  %s5 = inlined_call_operand.hbm [shape: f32[16,128], index: 5, kind: input, shape index: {}]
  %s6 = inlined_call_operand.hbm [shape: f32[16,128], index: 6, kind: output, shape index: {}]
  %s7 = sld [smem:[#allocation0]]
  $region58: #{tpu_custom_call.1} parent=0
    _
  %s9 = ssub.s32 1, %s7
  %s10 = scalar_select 0, %s9, %s7
  $region1: #{tpu_custom_call.1} parent=0
    #allocation2 [shape = 'u8[8192]{0}', space=vmem, size = 0x2000, scoped, tag = 'input window, operand 0, single buffered']
    #allocation3 [shape = 's32[1]{0}', space=sflag, size = 0x4, scoped, tag = 'scoped memory for tpu_custom_call.1']
    #allocation4 [shape = 's32[1]{0}', space=sflag, size = 0x4, scoped, tag = 'scoped memory for tpu_custom_call.1']
    #allocation5 [shape = 'u8[8192]{0}', space=vmem, size = 0x2000, scoped, tag = 'input window, operand 1, single buffered']
    #allocation6 [shape = 's32[1]{0}', space=sflag, size = 0x4, scoped, tag = 'scoped memory for tpu_custom_call.1']
    #allocation7 [shape = 'u8[16384]{0}', space=vmem, size = 0x4000, scoped, tag = 'input window, operand 2, single buffered']
    #allocation8 [shape = 'u8[196608]{0}', space=vmem, size = 0x30000, scoped, tag = 'input window, operand 3, single buffered']
    #allocation9 [shape = 's32[1]{0}', space=sflag, size = 0x4, scoped, tag = 'scoped memory for tpu_custom_call.1']
    #allocation10 [shape = 'u8[24576]{0}', space=vmem, size = 0x6000, scoped, tag = 'input window, operand 4, single buffered']
    #allocation11 [shape = 'u8[8192]{0}', space=vmem, size = 0x2000, scoped, tag = 'input window, operand 5, single buffered']
    #allocation12 [shape = 's32[1]{0}', space=sflag, size = 0x4, scoped, tag = 'scoped memory for tpu_custom_call.1']
    #allocation13 [shape = 'u8[8192]{0}', space=vmem, size = 0x2000, scoped, tag = 'output window, operand 0, single buffered']
    %11 = vsyncpa [#allocation3], 0
    %12 = vsyncpa [#allocation6], 0
    %13 = vsyncpa [#allocation9], 0
    %14 = vsyncpa [#allocation12], 0
    %15 = vsyncpa [#allocation4], 0
    // Predicated region
    $region2: #{tpu_custom_call.1} parent=1 // pred_check
      _
    $region3: #{tpu_custom_call.1} parent=1 // pred_check_branch
      %17 = sbr.rel (0) target = $region5
    $region4: #{tpu_custom_call.1} parent=1 // pred_region
      %s19 = ssub.s32 256, 256
      %20 = vsyncadd [#allocation3], %s19
      %s21 = sshll.u32 [#allocation2], 4
      %s22 = int_to_ptr.vmem [resolvable:$true] %s21
      %27 = dma.hbm_to_vmem [thread:$0]  %s0, 256, %s22, [#allocation3], 128, 128, 8
    $region5: #{tpu_custom_call.1} parent=1 // pred_fallthru
      _
    // Predicated region
    $region6: #{tpu_custom_call.1} parent=1 // pred_check
      _
    $region7: #{tpu_custom_call.1} parent=1 // pred_check_branch
      %29 = sbr.rel (0) target = $region9
    $region8: #{tpu_custom_call.1} parent=1 // pred_region
      %s31 = ssub.s32 256, 256
      %32 = vsyncadd [#allocation6], %s31
      %s33 = sshll.u32 [#allocation5], 4
      %s34 = int_to_ptr.vmem [resolvable:$true] %s33
      %39 = dma.hbm_to_vmem [thread:$0]  %s1, 256, %s34, [#allocation6], 128, 128, 8
    $region9: #{tpu_custom_call.1} parent=1 // pred_fallthru
      _
    // Predicated region
    $region10: #{tpu_custom_call.1} parent=1 // pred_check
      _
    $region11: #{tpu_custom_call.1} parent=1 // pred_check_branch
      %41 = sbr.rel (0) target = $region13
    $region12: #{tpu_custom_call.1} parent=1 // pred_region
      %s43 = ssub.s32 512, 512
      %44 = vsyncadd [#allocation6], %s43
      %s45 = sshll.u32 [#allocation7], 4
      %s46 = int_to_ptr.vmem [resolvable:$true] %s45
      %51 = dma.hbm_to_vmem [thread:$0]  %s2, 512, %s46, [#allocation6], 128, 128, 8
    $region13: #{tpu_custom_call.1} parent=1 // pred_fallthru
      _
    // Predicated region
    $region14: #{tpu_custom_call.1} parent=1 // pred_check
      _
    $region15: #{tpu_custom_call.1} parent=1 // pred_check_branch
      %53 = sbr.rel (0) target = $region17
    $region16: #{tpu_custom_call.1} parent=1 // pred_region
      %s55 = ssub.s32 6144, 6144
      %56 = vsyncadd [#allocation9], %s55
      %s57 = sshll.u32 [#allocation8], 4
      %s58 = int_to_ptr.vmem [resolvable:$true] %s57
      %63 = dma.hbm_to_vmem [thread:$0]  %s3, 6144, %s58, [#allocation9], 128, 128, 8
    $region17: #{tpu_custom_call.1} parent=1 // pred_fallthru
      _
    // Predicated region
    $region18: #{tpu_custom_call.1} parent=1 // pred_check
      _
    $region19: #{tpu_custom_call.1} parent=1 // pred_check_branch
      %65 = sbr.rel (0) target = $region21
    $region20: #{tpu_custom_call.1} parent=1 // pred_region
      %s67 = ssub.s32 768, 768
      %68 = vsyncadd [#allocation9], %s67
      %s69 = sshll.u32 [#allocation10], 4
      %s70 = int_to_ptr.vmem [resolvable:$true] %s69
      %75 = dma.hbm_to_vmem [thread:$0]  %s4, 768, %s70, [#allocation9], 128, 128, 8
    $region21: #{tpu_custom_call.1} parent=1 // pred_fallthru
      _
    // Predicated region
    $region22: #{tpu_custom_call.1} parent=1 // pred_check
      _
    $region23: #{tpu_custom_call.1} parent=1 // pred_check_branch
      %77 = sbr.rel (0) target = $region25
    $region24: #{tpu_custom_call.1} parent=1 // pred_region
      %s79 = ssub.s32 256, 256
      %80 = vsyncadd [#allocation12], %s79
      %s81 = sshll.u32 [#allocation11], 4
      %s82 = int_to_ptr.vmem [resolvable:$true] %s81
      %87 = dma.hbm_to_vmem [thread:$0]  %s5, 256, %s82, [#allocation12], 128, 128, 8
    $region25: #{tpu_custom_call.1} parent=1 // pred_fallthru
      _
    // Predicated region
    $region26: #{tpu_custom_call.1} parent=1 // pred_check
      _
    $region27: #{tpu_custom_call.1} parent=1 // pred_check_branch
      %89 = sbr.rel (0) target = $region29
    $region28: #{tpu_custom_call.1} parent=1 // pred_region
      %90 = dma.done [#allocation3], 256
    $region29: #{tpu_custom_call.1} parent=1 // pred_fallthru
      _
    // Predicated region
    $region30: #{tpu_custom_call.1} parent=1 // pred_check
      _
    $region31: #{tpu_custom_call.1} parent=1 // pred_check_branch
      %92 = sbr.rel (0) target = $region33
    $region32: #{tpu_custom_call.1} parent=1 // pred_region
      %93 = dma.done [#allocation6], 256
    $region33: #{tpu_custom_call.1} parent=1 // pred_fallthru
      _
    // Predicated region
    $region34: #{tpu_custom_call.1} parent=1 // pred_check
      _
    $region35: #{tpu_custom_call.1} parent=1 // pred_check_branch
      %95 = sbr.rel (0) target = $region37
    $region36: #{tpu_custom_call.1} parent=1 // pred_region
      %96 = dma.done [#allocation6], 512
    $region37: #{tpu_custom_call.1} parent=1 // pred_fallthru
      _
    // Predicated region
    $region38: #{tpu_custom_call.1} parent=1 // pred_check
      _
    $region39: #{tpu_custom_call.1} parent=1 // pred_check_branch
      %98 = sbr.rel (0) target = $region41
    $region40: #{tpu_custom_call.1} parent=1 // pred_region
      %99 = dma.done [#allocation9], 6144
    $region41: #{tpu_custom_call.1} parent=1 // pred_fallthru
      _
    // Predicated region
    $region42: #{tpu_custom_call.1} parent=1 // pred_check
      _
    $region43: #{tpu_custom_call.1} parent=1 // pred_check_branch
      %101 = sbr.rel (0) target = $region45
    $region44: #{tpu_custom_call.1} parent=1 // pred_region
      %102 = dma.done [#allocation9], 768
    $region45: #{tpu_custom_call.1} parent=1 // pred_fallthru
      _
    // Predicated region
    $region46: #{tpu_custom_call.1} parent=1 // pred_check
      _
    $region47: #{tpu_custom_call.1} parent=1 // pred_check_branch
      %104 = sbr.rel (0) target = $region49
    $region48: #{tpu_custom_call.1} parent=1 // pred_region
      %105 = dma.done [#allocation12], 256
    $region49: #{tpu_custom_call.1} parent=1 // pred_fallthru
      _
    %v106 = vld [vmem:[#allocation11] sm:$0xff]
    %v107 = vld [vmem:[#allocation11 + $0x8] sm:$0xff]
    %v108 = vld [vmem:[#allocation2] sm:$0xff]
    %v109 = vld [vmem:[#allocation2 + $0x8] sm:$0xff]
    %v110 = vld [vmem:[#allocation7] sm:$0xff]
    %v111 = vld [vmem:[#allocation7 + $0x8] sm:$0xff]
    %v112 = vld [vmem:[#allocation5] sm:$0xff]
    %v113 = vld [vmem:[#allocation5 + $0x8] sm:$0xff]
    %s114 = scalar_lea.vmem [#allocation7], 16
    %v115 = vld [vmem:[%s114] sm:$0xff]
    %v116 = vld [vmem:[%s114 + $0x8] sm:$0xff]
    %vm117 = vcmask 130048
    %v119 = vsel %vm117, %v112, 0
    %v122 = vsel %vm117, %v113, 0
    %124 = vmatprep.subr.mxu0 0.0
    %125 = vmatpush1.msra.mxu0 0.0
    %126 = vmatprep.subr.mxu0 0.0
    %127 = vmatpush1.msra.mxu0 0.0
    %128 = vmatprep.subr.mxu0 0.0
    %129 = vmatpush1.msra.mxu0 0.0
    %130 = vmatprep.subr.mxu0 0.0
    %131 = vmatpush1.msra.mxu0 0.0
    %132 = vmatprep.subr.mxu0 0.0
    %133 = vmatpush1.msra.mxu0 0.0
    %134 = vmatprep.subr.mxu0 0.0
    %135 = vmatpush1.msra.mxu0 0.0
    %136 = vmatprep.subr.mxu0 0.0
    %137 = vmatpush1.msra.mxu0 0.0
    %138 = vmatprep.subr.mxu0 0.0
    %139 = vmatpush1.msra.mxu0 0.0
    %140 = vmatprep.subr.mxu0 0.0
    %141 = vmatpush1.msra.mxu0 0.0
    %142 = vmatprep.subr.mxu0 0.0
    %143 = vmatpush1.msra.mxu0 0.0
    %144 = vmatprep.subr.mxu0 0.0
    %145 = vmatpush1.msra.mxu0 0.0
    %146 = vmatprep.subr.mxu0 0.0
    %147 = vmatpush1.msra.mxu0 0.0
    %148 = vmatprep.subr.mxu0 0.0
    %149 = vmatpush1.msra.mxu0 0.0
    %150 = vmatprep.subr.mxu0 0.0
    %151 = vmatpush1.msra.mxu0 0.0
    %152 = vmatprep.subr.mxu0 0.0
    %153 = vmatpush1.msra.mxu0 %v116
    %154 = vmatprep.subr.mxu0 0.0
    %155 = vmatpush1.msra.mxu0 %v115
    %156 = vmatprep.subr.mxu0 0.0
    %157 = vmatpush2.msra.mxu0 0.0
    %158 = vmatprep.subr.mxu0 0.0
    %159 = vmatpush2.msra.mxu0 0.0
    %160 = vmatprep.subr.mxu0 0.0
    %161 = vmatpush2.msra.mxu0 0.0
    %162 = vmatprep.subr.mxu0 0.0
    %163 = vmatpush2.msra.mxu0 0.0
    %164 = vmatprep.subr.mxu0 0.0
    %165 = vmatpush2.msra.mxu0 0.0
    %166 = vmatprep.subr.mxu0 0.0
    %167 = vmatpush2.msra.mxu0 0.0
    %168 = vmatprep.subr.mxu0 0.0
    %169 = vmatpush2.msra.mxu0 0.0
    %170 = vmatprep.subr.mxu0 0.0
    %171 = vmatpush2.msra.mxu0 0.0
    %172 = vmatprep.subr.mxu0 0.0
    %173 = vmatpush2.msra.mxu0 0.0
    %174 = vmatprep.subr.mxu0 0.0
    %175 = vmatpush2.msra.mxu0 0.0
    %176 = vmatprep.subr.mxu0 0.0
    %177 = vmatpush2.msra.mxu0 0.0
    %178 = vmatprep.subr.mxu0 0.0
    %179 = vmatpush2.msra.mxu0 0.0
    %180 = vmatprep.subr.mxu0 0.0
    %181 = vmatpush2.msra.mxu0 0.0
    %182 = vmatprep.subr.mxu0 0.0
    %183 = vmatpush2.msra.mxu0 0.0
    %184 = vmatprep.subr.mxu0 0.0
    %185 = vmatpush2.msra.mxu0 0.0
    %186 = vmatprep.subr.mxu0 0.0
    %187 = vmatpush2.msra.mxu0 0.0
    %188 = vmatprep.mubr.f32.mxu0 0.0
    %189 = vmatmul.mubr.f32.gmra.mxu0 %v119
    %v190 = vpop.f32.mrf.mxu0
    %v191 = vadd.f32 0.0, %v190
    %v192 = vpop.f32.mrf.mxu0
    %193 = vmatprep.mubr.f32.mxu0 0.0
    %194 = vmatmul.mubr.f32.gmra.mxu0 %v122
    %v195 = vpop.f32.mrf.mxu0
    %v196 = vadd.f32 0.0, %v195
    %v197 = vpop.f32.mrf.mxu0
    %198 = vdwg.mxu0
    %v200 = vsel %vm117, %v108, 0
    %v203 = vsel %vm117, %v109, 0
    %205 = vmatprep.subr.mxu0 0.0
    %206 = vmatpush1.msra.mxu0 0.0
    %207 = vmatprep.subr.mxu0 0.0
    %208 = vmatpush1.msra.mxu0 0.0
    %209 = vmatprep.subr.mxu0 0.0
    %210 = vmatpush1.msra.mxu0 0.0
    %211 = vmatprep.subr.mxu0 0.0
    %212 = vmatpush1.msra.mxu0 0.0
    %213 = vmatprep.subr.mxu0 0.0
    %214 = vmatpush1.msra.mxu0 0.0
    %215 = vmatprep.subr.mxu0 0.0
    %216 = vmatpush1.msra.mxu0 0.0
    %217 = vmatprep.subr.mxu0 0.0
    %218 = vmatpush1.msra.mxu0 0.0
    %219 = vmatprep.subr.mxu0 0.0
    %220 = vmatpush1.msra.mxu0 0.0
    %221 = vmatprep.subr.mxu0 0.0
    %222 = vmatpush1.msra.mxu0 0.0
    %223 = vmatprep.subr.mxu0 0.0
    %224 = vmatpush1.msra.mxu0 0.0
    %225 = vmatprep.subr.mxu0 0.0
    %226 = vmatpush1.msra.mxu0 0.0
    %227 = vmatprep.subr.mxu0 0.0
    %228 = vmatpush1.msra.mxu0 0.0
    %229 = vmatprep.subr.mxu0 0.0
    %230 = vmatpush1.msra.mxu0 0.0
    %231 = vmatprep.subr.mxu0 0.0
    %232 = vmatpush1.msra.mxu0 0.0
    %233 = vmatprep.subr.mxu0 0.0
    %234 = vmatpush1.msra.mxu0 %v111
    %235 = vmatprep.subr.mxu0 0.0
    %236 = vmatpush1.msra.mxu0 %v110
    %237 = vmatprep.subr.mxu0 0.0
    %238 = vmatpush2.msra.mxu0 0.0
    %239 = vmatprep.subr.mxu0 0.0
    %240 = vmatpush2.msra.mxu0 0.0
    %241 = vmatprep.subr.mxu0 0.0
    %242 = vmatpush2.msra.mxu0 0.0
    %243 = vmatprep.subr.mxu0 0.0
    %244 = vmatpush2.msra.mxu0 0.0
    %245 = vmatprep.subr.mxu0 0.0
    %246 = vmatpush2.msra.mxu0 0.0
    %247 = vmatprep.subr.mxu0 0.0
    %248 = vmatpush2.msra.mxu0 0.0
    %249 = vmatprep.subr.mxu0 0.0
    %250 = vmatpush2.msra.mxu0 0.0
    %251 = vmatprep.subr.mxu0 0.0
    %252 = vmatpush2.msra.mxu0 0.0
    %253 = vmatprep.subr.mxu0 0.0
    %254 = vmatpush2.msra.mxu0 0.0
    %255 = vmatprep.subr.mxu0 0.0
    %256 = vmatpush2.msra.mxu0 0.0
    %257 = vmatprep.subr.mxu0 0.0
    %258 = vmatpush2.msra.mxu0 0.0
    %259 = vmatprep.subr.mxu0 0.0
    %260 = vmatpush2.msra.mxu0 0.0
    %261 = vmatprep.subr.mxu0 0.0
    %262 = vmatpush2.msra.mxu0 0.0
    %263 = vmatprep.subr.mxu0 0.0
    %264 = vmatpush2.msra.mxu0 0.0
    %265 = vmatprep.subr.mxu0 0.0
    %266 = vmatpush2.msra.mxu0 0.0
    %267 = vmatprep.subr.mxu0 0.0
    %268 = vmatpush2.msra.mxu0 0.0
    %269 = vmatprep.mubr.f32.mxu0 0.0
    %270 = vmatmul.mubr.f32.gmra.mxu0 %v200
    %v271 = vpop.f32.mrf.mxu0
    %v272 = vadd.f32 %v191, %v271
    %v273 = vpop.f32.mrf.mxu0
    %274 = vmatprep.mubr.f32.mxu0 0.0
    %275 = vmatmul.mubr.f32.gmra.mxu0 %v203
    %v276 = vpop.f32.mrf.mxu0
    %v277 = vadd.f32 %v196, %v276
    %v278 = vpop.f32.mrf.mxu0
    %279 = vdwg.mxu0
    %v280 = vlaneseq
    %v281 = vshrl.u32 %v280, 7
    %v282 = vsub.s32 0, %v281
    %v283 = vrot.slane %v106, %v282
    %v284 = vadd.f32 %v272, %v283
    %v285 = vadd.f32 %v277, %v283
    %v286 = vlaneseq
    %v287 = vshrl.u32 %v286, 7
    %v288 = vsub.s32 1, %v287
    %v289 = vrot.slane %v106, %v288
    %v290 = vmul.f32 %v284, %v289
    %v291 = vmul.f32 %v285, %v289
    %v292 = vsub.f32 %v284, %v290
    %v293 = vsub.f32 %v285, %v291
    %v294 = vmul.f32 %v292, 0.5
    %v295 = vmul.f32 %v293, 0.5
    %v296 = vmul.f32 %v292, 0.70710677
    %v297 = vmul.f32 %v293, 0.70710677
    %v298 = verf.f32.pop %v296
    %v299 = verf.f32.pop %v297
    %v300 = vadd.f32 %v298, 1.0
    %v301 = vadd.f32 %v299, 1.0
    %v302 = vmul.f32 %v294, %v300
    %v303 = vmul.f32 %v295, %v301
    %v304 = vld [vmem:[#allocation8] sm:$0xff]
    %v305 = vld [vmem:[#allocation8 + $0x8] sm:$0xff]
    %v306 = vld [vmem:[#allocation8 + $0x10] sm:$0xff]
    %v307 = vld [vmem:[#allocation8 + $0x18] sm:$0xff]
    %v308 = vld [vmem:[#allocation8 + $0x20] sm:$0xff]
    %v309 = vld [vmem:[#allocation8 + $0x28] sm:$0xff]
    %v310 = vlaneseq
    %v311 = vshrl.u32 %v310, 7
    %v312 = vsub.s32 3, %v311
    %v313 = vrot.slane %v106, %v312
    %vm314 = vcmask 392192
    %v316 = vsel %vm314, %v302, 0
    %v319 = vsel %vm314, %v303, 0
    %321 = vmatprep.subr.mxu0 0.0
    %322 = vmatpush1.msra.mxu0 0.0
    %323 = vmatprep.subr.mxu0 0.0
    %324 = vmatpush1.msra.mxu0 0.0
    %325 = vmatprep.subr.mxu0 0.0
    %326 = vmatpush1.msra.mxu0 0.0
    %327 = vmatprep.subr.mxu0 0.0
    %328 = vmatpush1.msra.mxu0 0.0
    %329 = vmatprep.subr.mxu0 0.0
    %330 = vmatpush1.msra.mxu0 0.0
    %331 = vmatprep.subr.mxu0 0.0
    %332 = vmatpush1.msra.mxu0 0.0
    %333 = vmatprep.subr.mxu0 0.0
    %334 = vmatpush1.msra.mxu0 0.0
    %335 = vmatprep.subr.mxu0 0.0
    %336 = vmatpush1.msra.mxu0 0.0
    %337 = vmatprep.subr.mxu0 0.0
    %338 = vmatpush1.msra.mxu0 0.0
    %339 = vmatprep.subr.mxu0 0.0
    %340 = vmatpush1.msra.mxu0 0.0
    %341 = vmatprep.subr.mxu0 0.0
    %342 = vmatpush1.msra.mxu0 %v309
    %343 = vmatprep.subr.mxu0 0.0
    %344 = vmatpush1.msra.mxu0 %v308
    %345 = vmatprep.subr.mxu0 0.0
    %346 = vmatpush1.msra.mxu0 %v307
    %347 = vmatprep.subr.mxu0 0.0
    %348 = vmatpush1.msra.mxu0 %v306
    %349 = vmatprep.subr.mxu0 0.0
    %350 = vmatpush1.msra.mxu0 %v305
    %351 = vmatprep.subr.mxu0 0.0
    %352 = vmatpush1.msra.mxu0 %v304
    %353 = vmatprep.subr.mxu0 0.0
    %354 = vmatpush2.msra.mxu0 0.0
    %355 = vmatprep.subr.mxu0 0.0
    %356 = vmatpush2.msra.mxu0 0.0
    %357 = vmatprep.subr.mxu0 0.0
    %358 = vmatpush2.msra.mxu0 0.0
    %359 = vmatprep.subr.mxu0 0.0
    %360 = vmatpush2.msra.mxu0 0.0
    %361 = vmatprep.subr.mxu0 0.0
    %362 = vmatpush2.msra.mxu0 0.0
    %363 = vmatprep.subr.mxu0 0.0
    %364 = vmatpush2.msra.mxu0 0.0
    %365 = vmatprep.subr.mxu0 0.0
    %366 = vmatpush2.msra.mxu0 0.0
    %367 = vmatprep.subr.mxu0 0.0
    %368 = vmatpush2.msra.mxu0 0.0
    %369 = vmatprep.subr.mxu0 0.0
    %370 = vmatpush2.msra.mxu0 0.0
    %371 = vmatprep.subr.mxu0 0.0
    %372 = vmatpush2.msra.mxu0 0.0
    %373 = vmatprep.subr.mxu0 0.0
    %374 = vmatpush2.msra.mxu0 0.0
    %375 = vmatprep.subr.mxu0 0.0
    %376 = vmatpush2.msra.mxu0 0.0
    %377 = vmatprep.subr.mxu0 0.0
    %378 = vmatpush2.msra.mxu0 0.0
    %379 = vmatprep.subr.mxu0 0.0
    %380 = vmatpush2.msra.mxu0 0.0
    %381 = vmatprep.subr.mxu0 0.0
    %382 = vmatpush2.msra.mxu0 0.0
    %383 = vmatprep.subr.mxu0 0.0
    %384 = vmatpush2.msra.mxu0 0.0
    %385 = vmatprep.mubr.f32.mxu0 0.0
    %386 = vmatmul.mubr.f32.gmra.mxu0 %v316
    %v387 = vpop.f32.mrf.mxu0
    %v388 = vadd.f32 %v313, %v387
    %v389 = vpop.f32.mrf.mxu0
    %390 = vmatprep.mubr.f32.mxu0 0.0
    %391 = vmatmul.mubr.f32.gmra.mxu0 %v319
    %v392 = vpop.f32.mrf.mxu0
    %v393 = vadd.f32 %v313, %v392
    %v394 = vpop.f32.mrf.mxu0
    %395 = vdwg.mxu0
    %v396 = vmul.f32 %v388, 0.5
    %v397 = vmul.f32 %v393, 0.5
    %v398 = vmul.f32 %v388, 0.70710677
    %v399 = vmul.f32 %v393, 0.70710677
    %v400 = verf.f32.pop %v398
    %v401 = verf.f32.pop %v399
    %v402 = vadd.f32 %v400, 1.0
    %v403 = vadd.f32 %v401, 1.0
    %v404 = vmul.f32 %v396, %v402
    %v405 = vmul.f32 %v397, %v403
    %v406 = vadd.f32 %v290, %v404
    %v407 = vadd.f32 %v291, %v405
    %s408 = scalar_lea.vmem [#allocation8], 48
    %v409 = vld [vmem:[%s408] sm:$0xff]
    %v410 = vld [vmem:[%s408 + $0x8] sm:$0xff]
    %v411 = vld [vmem:[%s408 + $0x10] sm:$0xff]
    %v412 = vld [vmem:[%s408 + $0x18] sm:$0xff]
    %v413 = vld [vmem:[%s408 + $0x20] sm:$0xff]
    %v414 = vld [vmem:[%s408 + $0x28] sm:$0xff]
    %v415 = vlaneseq
    %v416 = vshrl.u32 %v415, 7
    %v417 = vsub.s32 4, %v416
    %v418 = vrot.slane %v106, %v417
    %v420 = vsel %vm314, %v406, 0
    %v423 = vsel %vm314, %v407, 0
    %425 = vmatprep.subr.mxu0 0.0
    %426 = vmatpush1.msra.mxu0 0.0
    %427 = vmatprep.subr.mxu0 0.0
    %428 = vmatpush1.msra.mxu0 0.0
    %429 = vmatprep.subr.mxu0 0.0
    %430 = vmatpush1.msra.mxu0 0.0
    %431 = vmatprep.subr.mxu0 0.0
    %432 = vmatpush1.msra.mxu0 0.0
    %433 = vmatprep.subr.mxu0 0.0
    %434 = vmatpush1.msra.mxu0 0.0
    %435 = vmatprep.subr.mxu0 0.0
    %436 = vmatpush1.msra.mxu0 0.0
    %437 = vmatprep.subr.mxu0 0.0
    %438 = vmatpush1.msra.mxu0 0.0
    %439 = vmatprep.subr.mxu0 0.0
    %440 = vmatpush1.msra.mxu0 0.0
    %441 = vmatprep.subr.mxu0 0.0
    %442 = vmatpush1.msra.mxu0 0.0
    %443 = vmatprep.subr.mxu0 0.0
    %444 = vmatpush1.msra.mxu0 0.0
    %445 = vmatprep.subr.mxu0 0.0
    %446 = vmatpush1.msra.mxu0 %v414
    %447 = vmatprep.subr.mxu0 0.0
    %448 = vmatpush1.msra.mxu0 %v413
    %449 = vmatprep.subr.mxu0 0.0
    %450 = vmatpush1.msra.mxu0 %v412
    %451 = vmatprep.subr.mxu0 0.0
    %452 = vmatpush1.msra.mxu0 %v411
    %453 = vmatprep.subr.mxu0 0.0
    %454 = vmatpush1.msra.mxu0 %v410
    %455 = vmatprep.subr.mxu0 0.0
    %456 = vmatpush1.msra.mxu0 %v409
    %457 = vmatprep.subr.mxu0 0.0
    %458 = vmatpush2.msra.mxu0 0.0
    %459 = vmatprep.subr.mxu0 0.0
    %460 = vmatpush2.msra.mxu0 0.0
    %461 = vmatprep.subr.mxu0 0.0
    %462 = vmatpush2.msra.mxu0 0.0
    %463 = vmatprep.subr.mxu0 0.0
    %464 = vmatpush2.msra.mxu0 0.0
    %465 = vmatprep.subr.mxu0 0.0
    %466 = vmatpush2.msra.mxu0 0.0
    %467 = vmatprep.subr.mxu0 0.0
    %468 = vmatpush2.msra.mxu0 0.0
    %469 = vmatprep.subr.mxu0 0.0
    %470 = vmatpush2.msra.mxu0 0.0
    %471 = vmatprep.subr.mxu0 0.0
    %472 = vmatpush2.msra.mxu0 0.0
    %473 = vmatprep.subr.mxu0 0.0
    %474 = vmatpush2.msra.mxu0 0.0
    %475 = vmatprep.subr.mxu0 0.0
    %476 = vmatpush2.msra.mxu0 0.0
    %477 = vmatprep.subr.mxu0 0.0
    %478 = vmatpush2.msra.mxu0 0.0
    %479 = vmatprep.subr.mxu0 0.0
    %480 = vmatpush2.msra.mxu0 0.0
    %481 = vmatprep.subr.mxu0 0.0
    %482 = vmatpush2.msra.mxu0 0.0
    %483 = vmatprep.subr.mxu0 0.0
    %484 = vmatpush2.msra.mxu0 0.0
    %485 = vmatprep.subr.mxu0 0.0
    %486 = vmatpush2.msra.mxu0 0.0
    %487 = vmatprep.subr.mxu0 0.0
    %488 = vmatpush2.msra.mxu0 0.0
    %489 = vmatprep.mubr.f32.mxu0 0.0
    %490 = vmatmul.mubr.f32.gmra.mxu0 %v420
    %v491 = vpop.f32.mrf.mxu0
    %v492 = vadd.f32 %v418, %v491
    %v493 = vpop.f32.mrf.mxu0
    %494 = vmatprep.mubr.f32.mxu0 0.0
    %495 = vmatmul.mubr.f32.gmra.mxu0 %v423
    %v496 = vpop.f32.mrf.mxu0
    %v497 = vadd.f32 %v418, %v496
    %v498 = vpop.f32.mrf.mxu0
    %499 = vdwg.mxu0
    %v500 = vmul.f32 %v492, 0.5
    %v501 = vmul.f32 %v497, 0.5
    %v502 = vmul.f32 %v492, 0.70710677
    %v503 = vmul.f32 %v497, 0.70710677
    %v504 = verf.f32.pop %v502
    %v505 = verf.f32.pop %v503
    %v506 = vadd.f32 %v504, 1.0
    %v507 = vadd.f32 %v505, 1.0
    %v508 = vmul.f32 %v500, %v506
    %v509 = vmul.f32 %v501, %v507
    %s510 = scalar_lea.vmem [#allocation8], 96
    %v511 = vld [vmem:[%s510] sm:$0xff]
    %v512 = vld [vmem:[%s510 + $0x8] sm:$0xff]
    %v513 = vld [vmem:[%s510 + $0x10] sm:$0xff]
    %v514 = vld [vmem:[%s510 + $0x18] sm:$0xff]
    %v515 = vld [vmem:[%s510 + $0x20] sm:$0xff]
    %v516 = vld [vmem:[%s510 + $0x28] sm:$0xff]
    %v517 = vlaneseq
    %v518 = vshrl.u32 %v517, 7
    %v519 = vsub.s32 5, %v518
    %v520 = vrot.slane %v106, %v519
    %v522 = vsel %vm314, %v404, 0
    %v525 = vsel %vm314, %v405, 0
    %527 = vmatprep.subr.mxu0 0.0
    %528 = vmatpush1.msra.mxu0 0.0
    %529 = vmatprep.subr.mxu0 0.0
    %530 = vmatpush1.msra.mxu0 0.0
    %531 = vmatprep.subr.mxu0 0.0
    %532 = vmatpush1.msra.mxu0 0.0
    %533 = vmatprep.subr.mxu0 0.0
    %534 = vmatpush1.msra.mxu0 0.0
    %535 = vmatprep.subr.mxu0 0.0
    %536 = vmatpush1.msra.mxu0 0.0
    %537 = vmatprep.subr.mxu0 0.0
    %538 = vmatpush1.msra.mxu0 0.0
    %539 = vmatprep.subr.mxu0 0.0
    %540 = vmatpush1.msra.mxu0 0.0
    %541 = vmatprep.subr.mxu0 0.0
    %542 = vmatpush1.msra.mxu0 0.0
    %543 = vmatprep.subr.mxu0 0.0
    %544 = vmatpush1.msra.mxu0 0.0
    %545 = vmatprep.subr.mxu0 0.0
    %546 = vmatpush1.msra.mxu0 0.0
    %547 = vmatprep.subr.mxu0 0.0
    %548 = vmatpush1.msra.mxu0 %v516
    %549 = vmatprep.subr.mxu0 0.0
    %550 = vmatpush1.msra.mxu0 %v515
    %551 = vmatprep.subr.mxu0 0.0
    %552 = vmatpush1.msra.mxu0 %v514
    %553 = vmatprep.subr.mxu0 0.0
    %554 = vmatpush1.msra.mxu0 %v513
    %555 = vmatprep.subr.mxu0 0.0
    %556 = vmatpush1.msra.mxu0 %v512
    %557 = vmatprep.subr.mxu0 0.0
    %558 = vmatpush1.msra.mxu0 %v511
    %559 = vmatprep.subr.mxu0 0.0
    %560 = vmatpush2.msra.mxu0 0.0
    %561 = vmatprep.subr.mxu0 0.0
    %562 = vmatpush2.msra.mxu0 0.0
    %563 = vmatprep.subr.mxu0 0.0
    %564 = vmatpush2.msra.mxu0 0.0
    %565 = vmatprep.subr.mxu0 0.0
    %566 = vmatpush2.msra.mxu0 0.0
    %567 = vmatprep.subr.mxu0 0.0
    %568 = vmatpush2.msra.mxu0 0.0
    %569 = vmatprep.subr.mxu0 0.0
    %570 = vmatpush2.msra.mxu0 0.0
    %571 = vmatprep.subr.mxu0 0.0
    %572 = vmatpush2.msra.mxu0 0.0
    %573 = vmatprep.subr.mxu0 0.0
    %574 = vmatpush2.msra.mxu0 0.0
    %575 = vmatprep.subr.mxu0 0.0
    %576 = vmatpush2.msra.mxu0 0.0
    %577 = vmatprep.subr.mxu0 0.0
    %578 = vmatpush2.msra.mxu0 0.0
    %579 = vmatprep.subr.mxu0 0.0
    %580 = vmatpush2.msra.mxu0 0.0
    %581 = vmatprep.subr.mxu0 0.0
    %582 = vmatpush2.msra.mxu0 0.0
    %583 = vmatprep.subr.mxu0 0.0
    %584 = vmatpush2.msra.mxu0 0.0
    %585 = vmatprep.subr.mxu0 0.0
    %586 = vmatpush2.msra.mxu0 0.0
    %587 = vmatprep.subr.mxu0 0.0
    %588 = vmatpush2.msra.mxu0 0.0
    %589 = vmatprep.subr.mxu0 0.0
    %590 = vmatpush2.msra.mxu0 0.0
    %591 = vmatprep.mubr.f32.mxu0 0.0
    %592 = vmatmul.mubr.f32.gmra.mxu0 %v522
    %v593 = vpop.f32.mrf.mxu0
    %v594 = vadd.f32 %v520, %v593
    %v595 = vpop.f32.mrf.mxu0
    %596 = vmatprep.mubr.f32.mxu0 0.0
    %597 = vmatmul.mubr.f32.gmra.mxu0 %v525
    %v598 = vpop.f32.mrf.mxu0
    %v599 = vadd.f32 %v520, %v598
    %v600 = vpop.f32.mrf.mxu0
    %601 = vdwg.mxu0
    %v602 = vmul.f32 %v594, 0.5
    %v603 = vmul.f32 %v599, 0.5
    %v604 = vmul.f32 %v594, 0.70710677
    %v605 = vmul.f32 %v599, 0.70710677
    %v606 = verf.f32.pop %v604
    %v607 = verf.f32.pop %v605
    %v608 = vadd.f32 %v606, 1.0
    %v609 = vadd.f32 %v607, 1.0
    %v610 = vmul.f32 %v602, %v608
    %v611 = vmul.f32 %v603, %v609
    %v612 = vadd.f32 %v508, %v610
    %v613 = vadd.f32 %v509, %v611
    %s614 = scalar_lea.vmem [#allocation8], 144
    %v615 = vld [vmem:[%s614] sm:$0xff]
    %v616 = vld [vmem:[%s614 + $0x8] sm:$0xff]
    %v617 = vld [vmem:[%s614 + $0x10] sm:$0xff]
    %v618 = vld [vmem:[%s614 + $0x18] sm:$0xff]
    %v619 = vld [vmem:[%s614 + $0x20] sm:$0xff]
    %v620 = vld [vmem:[%s614 + $0x28] sm:$0xff]
    %v621 = vlaneseq
    %v622 = vshrl.u32 %v621, 7
    %v623 = vsub.s32 6, %v622
    %v624 = vrot.slane %v106, %v623
    %v626 = vsel %vm314, %v612, 0
    %v629 = vsel %vm314, %v613, 0
    %631 = vmatprep.subr.mxu0 0.0
    %632 = vmatpush1.msra.mxu0 0.0
    %633 = vmatprep.subr.mxu0 0.0
    %634 = vmatpush1.msra.mxu0 0.0
    %635 = vmatprep.subr.mxu0 0.0
    %636 = vmatpush1.msra.mxu0 0.0
    %637 = vmatprep.subr.mxu0 0.0
    %638 = vmatpush1.msra.mxu0 0.0
    %639 = vmatprep.subr.mxu0 0.0
    %640 = vmatpush1.msra.mxu0 0.0
    %641 = vmatprep.subr.mxu0 0.0
    %642 = vmatpush1.msra.mxu0 0.0
    %643 = vmatprep.subr.mxu0 0.0
    %644 = vmatpush1.msra.mxu0 0.0
    %645 = vmatprep.subr.mxu0 0.0
    %646 = vmatpush1.msra.mxu0 0.0
    %647 = vmatprep.subr.mxu0 0.0
    %648 = vmatpush1.msra.mxu0 0.0
    %649 = vmatprep.subr.mxu0 0.0
    %650 = vmatpush1.msra.mxu0 0.0
    %651 = vmatprep.subr.mxu0 0.0
    %652 = vmatpush1.msra.mxu0 %v620
    %653 = vmatprep.subr.mxu0 0.0
    %654 = vmatpush1.msra.mxu0 %v619
    %655 = vmatprep.subr.mxu0 0.0
    %656 = vmatpush1.msra.mxu0 %v618
    %657 = vmatprep.subr.mxu0 0.0
    %658 = vmatpush1.msra.mxu0 %v617
    %659 = vmatprep.subr.mxu0 0.0
    %660 = vmatpush1.msra.mxu0 %v616
    %661 = vmatprep.subr.mxu0 0.0
    %662 = vmatpush1.msra.mxu0 %v615
    %663 = vmatprep.subr.mxu0 0.0
    %664 = vmatpush2.msra.mxu0 0.0
    %665 = vmatprep.subr.mxu0 0.0
    %666 = vmatpush2.msra.mxu0 0.0
    %667 = vmatprep.subr.mxu0 0.0
    %668 = vmatpush2.msra.mxu0 0.0
    %669 = vmatprep.subr.mxu0 0.0
    %670 = vmatpush2.msra.mxu0 0.0
    %671 = vmatprep.subr.mxu0 0.0
    %672 = vmatpush2.msra.mxu0 0.0
    %673 = vmatprep.subr.mxu0 0.0
    %674 = vmatpush2.msra.mxu0 0.0
    %675 = vmatprep.subr.mxu0 0.0
    %676 = vmatpush2.msra.mxu0 0.0
    %677 = vmatprep.subr.mxu0 0.0
    %678 = vmatpush2.msra.mxu0 0.0
    %679 = vmatprep.subr.mxu0 0.0
    %680 = vmatpush2.msra.mxu0 0.0
    %681 = vmatprep.subr.mxu0 0.0
    %682 = vmatpush2.msra.mxu0 0.0
    %683 = vmatprep.subr.mxu0 0.0
    %684 = vmatpush2.msra.mxu0 0.0
    %685 = vmatprep.subr.mxu0 0.0
    %686 = vmatpush2.msra.mxu0 0.0
    %687 = vmatprep.subr.mxu0 0.0
    %688 = vmatpush2.msra.mxu0 0.0
    %689 = vmatprep.subr.mxu0 0.0
    %690 = vmatpush2.msra.mxu0 0.0
    %691 = vmatprep.subr.mxu0 0.0
    %692 = vmatpush2.msra.mxu0 0.0
    %693 = vmatprep.subr.mxu0 0.0
    %694 = vmatpush2.msra.mxu0 0.0
    %695 = vmatprep.mubr.f32.mxu0 0.0
    %696 = vmatmul.mubr.f32.gmra.mxu0 %v626
    %v697 = vpop.f32.mrf.mxu0
    %v698 = vadd.f32 %v624, %v697
    %v699 = vpop.f32.mrf.mxu0
    %700 = vmatprep.mubr.f32.mxu0 0.0
    %701 = vmatmul.mubr.f32.gmra.mxu0 %v629
    %v702 = vpop.f32.mrf.mxu0
    %v703 = vadd.f32 %v624, %v702
    %v704 = vpop.f32.mrf.mxu0
    %705 = vdwg.mxu0
    %v706 = vmul.f32 %v698, 0.5
    %v707 = vmul.f32 %v703, 0.5
    %v708 = vmul.f32 %v698, 0.70710677
    %v709 = vmul.f32 %v703, 0.70710677
    %v710 = verf.f32.pop %v708
    %v711 = verf.f32.pop %v709
    %v712 = vadd.f32 %v710, 1.0
    %v713 = vadd.f32 %v711, 1.0
    %v714 = vmul.f32 %v706, %v712
    %v715 = vmul.f32 %v707, %v713
    %v716 = vadd.f32 %v714, %v508
    %v717 = vadd.f32 %v715, %v509
    %s718 = scalar_lea.vmem [#allocation8], 192
    %v719 = vld [vmem:[%s718] sm:$0xff]
    %v720 = vld [vmem:[%s718 + $0x8] sm:$0xff]
    %v721 = vld [vmem:[%s718 + $0x10] sm:$0xff]
    %v722 = vld [vmem:[%s718 + $0x18] sm:$0xff]
    %v723 = vld [vmem:[%s718 + $0x20] sm:$0xff]
    %v724 = vld [vmem:[%s718 + $0x28] sm:$0xff]
    %v725 = vlaneseq
    %v726 = vshrl.u32 %v725, 7
    %v727 = vsub.s32 7, %v726
    %v728 = vrot.slane %v106, %v727
    %v730 = vsel %vm314, %v610, 0
    %v733 = vsel %vm314, %v611, 0
    %735 = vmatprep.subr.mxu0 0.0
    %736 = vmatpush1.msra.mxu0 0.0
    %737 = vmatprep.subr.mxu0 0.0
    %738 = vmatpush1.msra.mxu0 0.0
    %739 = vmatprep.subr.mxu0 0.0
    %740 = vmatpush1.msra.mxu0 0.0
    %741 = vmatprep.subr.mxu0 0.0
    %742 = vmatpush1.msra.mxu0 0.0
    %743 = vmatprep.subr.mxu0 0.0
    %744 = vmatpush1.msra.mxu0 0.0
    %745 = vmatprep.subr.mxu0 0.0
    %746 = vmatpush1.msra.mxu0 0.0
    %747 = vmatprep.subr.mxu0 0.0
    %748 = vmatpush1.msra.mxu0 0.0
    %749 = vmatprep.subr.mxu0 0.0
    %750 = vmatpush1.msra.mxu0 0.0
    %751 = vmatprep.subr.mxu0 0.0
    %752 = vmatpush1.msra.mxu0 0.0
    %753 = vmatprep.subr.mxu0 0.0
    %754 = vmatpush1.msra.mxu0 0.0
    %755 = vmatprep.subr.mxu0 0.0
    %756 = vmatpush1.msra.mxu0 %v724
    %757 = vmatprep.subr.mxu0 0.0
    %758 = vmatpush1.msra.mxu0 %v723
    %759 = vmatprep.subr.mxu0 0.0
    %760 = vmatpush1.msra.mxu0 %v722
    %761 = vmatprep.subr.mxu0 0.0
    %762 = vmatpush1.msra.mxu0 %v721
    %763 = vmatprep.subr.mxu0 0.0
    %764 = vmatpush1.msra.mxu0 %v720
    %765 = vmatprep.subr.mxu0 0.0
    %766 = vmatpush1.msra.mxu0 %v719
    %767 = vmatprep.subr.mxu0 0.0
    %768 = vmatpush2.msra.mxu0 0.0
    %769 = vmatprep.subr.mxu0 0.0
    %770 = vmatpush2.msra.mxu0 0.0
    %771 = vmatprep.subr.mxu0 0.0
    %772 = vmatpush2.msra.mxu0 0.0
    %773 = vmatprep.subr.mxu0 0.0
    %774 = vmatpush2.msra.mxu0 0.0
    %775 = vmatprep.subr.mxu0 0.0
    %776 = vmatpush2.msra.mxu0 0.0
    %777 = vmatprep.subr.mxu0 0.0
    %778 = vmatpush2.msra.mxu0 0.0
    %779 = vmatprep.subr.mxu0 0.0
    %780 = vmatpush2.msra.mxu0 0.0
    %781 = vmatprep.subr.mxu0 0.0
    %782 = vmatpush2.msra.mxu0 0.0
    %783 = vmatprep.subr.mxu0 0.0
    %784 = vmatpush2.msra.mxu0 0.0
    %785 = vmatprep.subr.mxu0 0.0
    %786 = vmatpush2.msra.mxu0 0.0
    %787 = vmatprep.subr.mxu0 0.0
    %788 = vmatpush2.msra.mxu0 0.0
    %789 = vmatprep.subr.mxu0 0.0
    %790 = vmatpush2.msra.mxu0 0.0
    %791 = vmatprep.subr.mxu0 0.0
    %792 = vmatpush2.msra.mxu0 0.0
    %793 = vmatprep.subr.mxu0 0.0
    %794 = vmatpush2.msra.mxu0 0.0
    %795 = vmatprep.subr.mxu0 0.0
    %796 = vmatpush2.msra.mxu0 0.0
    %797 = vmatprep.subr.mxu0 0.0
    %798 = vmatpush2.msra.mxu0 0.0
    %799 = vmatprep.mubr.f32.mxu0 0.0
    %800 = vmatmul.mubr.f32.gmra.mxu0 %v730
    %v801 = vpop.f32.mrf.mxu0
    %v802 = vadd.f32 %v728, %v801
    %v803 = vpop.f32.mrf.mxu0
    %804 = vmatprep.mubr.f32.mxu0 0.0
    %805 = vmatmul.mubr.f32.gmra.mxu0 %v733
    %v806 = vpop.f32.mrf.mxu0
    %v807 = vadd.f32 %v728, %v806
    %v808 = vpop.f32.mrf.mxu0
    %809 = vdwg.mxu0
    %v810 = vmul.f32 %v802, 0.5
    %v811 = vmul.f32 %v807, 0.5
    %v812 = vmul.f32 %v802, 0.70710677
    %v813 = vmul.f32 %v807, 0.70710677
    %v814 = verf.f32.pop %v812
    %v815 = verf.f32.pop %v813
    %v816 = vadd.f32 %v814, 1.0
    %v817 = vadd.f32 %v815, 1.0
    %v818 = vmul.f32 %v810, %v816
    %v819 = vmul.f32 %v811, %v817
    %v820 = vadd.f32 %v716, %v818
    %v821 = vadd.f32 %v717, %v819
    %s822 = scalar_lea.vmem [#allocation8], 240
    %v823 = vld [vmem:[%s822] sm:$0xff]
    %v824 = vld [vmem:[%s822 + $0x8] sm:$0xff]
    %v825 = vld [vmem:[%s822 + $0x10] sm:$0xff]
    %v826 = vld [vmem:[%s822 + $0x18] sm:$0xff]
    %v827 = vld [vmem:[%s822 + $0x20] sm:$0xff]
    %v828 = vld [vmem:[%s822 + $0x28] sm:$0xff]
    %v829 = vlaneseq
    %v830 = vshrl.u32 %v829, 7
    %v831 = vsub.s32 0, %v830
    %v832 = vrot.slane %v107, %v831
    %v834 = vsel %vm314, %v820, 0
    %v837 = vsel %vm314, %v821, 0
    %839 = vmatprep.subr.mxu0 0.0
    %840 = vmatpush1.msra.mxu0 0.0
    %841 = vmatprep.subr.mxu0 0.0
    %842 = vmatpush1.msra.mxu0 0.0
    %843 = vmatprep.subr.mxu0 0.0
    %844 = vmatpush1.msra.mxu0 0.0
    %845 = vmatprep.subr.mxu0 0.0
    %846 = vmatpush1.msra.mxu0 0.0
    %847 = vmatprep.subr.mxu0 0.0
    %848 = vmatpush1.msra.mxu0 0.0
    %849 = vmatprep.subr.mxu0 0.0
    %850 = vmatpush1.msra.mxu0 0.0
    %851 = vmatprep.subr.mxu0 0.0
    %852 = vmatpush1.msra.mxu0 0.0
    %853 = vmatprep.subr.mxu0 0.0
    %854 = vmatpush1.msra.mxu0 0.0
    %855 = vmatprep.subr.mxu0 0.0
    %856 = vmatpush1.msra.mxu0 0.0
    %857 = vmatprep.subr.mxu0 0.0
    %858 = vmatpush1.msra.mxu0 0.0
    %859 = vmatprep.subr.mxu0 0.0
    %860 = vmatpush1.msra.mxu0 %v828
    %861 = vmatprep.subr.mxu0 0.0
    %862 = vmatpush1.msra.mxu0 %v827
    %863 = vmatprep.subr.mxu0 0.0
    %864 = vmatpush1.msra.mxu0 %v826
    %865 = vmatprep.subr.mxu0 0.0
    %866 = vmatpush1.msra.mxu0 %v825
    %867 = vmatprep.subr.mxu0 0.0
    %868 = vmatpush1.msra.mxu0 %v824
    %869 = vmatprep.subr.mxu0 0.0
    %870 = vmatpush1.msra.mxu0 %v823
    %871 = vmatprep.subr.mxu0 0.0
    %872 = vmatpush2.msra.mxu0 0.0
    %873 = vmatprep.subr.mxu0 0.0
    %874 = vmatpush2.msra.mxu0 0.0
    %875 = vmatprep.subr.mxu0 0.0
    %876 = vmatpush2.msra.mxu0 0.0
    %877 = vmatprep.subr.mxu0 0.0
    %878 = vmatpush2.msra.mxu0 0.0
    %879 = vmatprep.subr.mxu0 0.0
    %880 = vmatpush2.msra.mxu0 0.0
    %881 = vmatprep.subr.mxu0 0.0
    %882 = vmatpush2.msra.mxu0 0.0
    %883 = vmatprep.subr.mxu0 0.0
    %884 = vmatpush2.msra.mxu0 0.0
    %885 = vmatprep.subr.mxu0 0.0
    %886 = vmatpush2.msra.mxu0 0.0
    %887 = vmatprep.subr.mxu0 0.0
    %888 = vmatpush2.msra.mxu0 0.0
    %889 = vmatprep.subr.mxu0 0.0
    %890 = vmatpush2.msra.mxu0 0.0
    %891 = vmatprep.subr.mxu0 0.0
    %892 = vmatpush2.msra.mxu0 0.0
    %893 = vmatprep.subr.mxu0 0.0
    %894 = vmatpush2.msra.mxu0 0.0
    %895 = vmatprep.subr.mxu0 0.0
    %896 = vmatpush2.msra.mxu0 0.0
    %897 = vmatprep.subr.mxu0 0.0
    %898 = vmatpush2.msra.mxu0 0.0
    %899 = vmatprep.subr.mxu0 0.0
    %900 = vmatpush2.msra.mxu0 0.0
    %901 = vmatprep.subr.mxu0 0.0
    %902 = vmatpush2.msra.mxu0 0.0
    %903 = vmatprep.mubr.f32.mxu0 0.0
    %904 = vmatmul.mubr.f32.gmra.mxu0 %v834
    %v905 = vpop.f32.mrf.mxu0
    %v906 = vadd.f32 %v832, %v905
    %v907 = vpop.f32.mrf.mxu0
    %908 = vmatprep.mubr.f32.mxu0 0.0
    %909 = vmatmul.mubr.f32.gmra.mxu0 %v837
    %v910 = vpop.f32.mrf.mxu0
    %v911 = vadd.f32 %v832, %v910
    %v912 = vpop.f32.mrf.mxu0
    %913 = vdwg.mxu0
    %v914 = vmul.f32 %v906, 0.5
    %v915 = vmul.f32 %v911, 0.5
    %v916 = vmul.f32 %v906, 0.70710677
    %v917 = vmul.f32 %v911, 0.70710677
    %v918 = verf.f32.pop %v916
    %v919 = verf.f32.pop %v917
    %v920 = vadd.f32 %v918, 1.0
    %v921 = vadd.f32 %v919, 1.0
    %v922 = vmul.f32 %v914, %v920
    %v923 = vmul.f32 %v915, %v921
    %s924 = scalar_lea.vmem [#allocation8], 288
    %v925 = vld [vmem:[%s924] sm:$0xff]
    %v926 = vld [vmem:[%s924 + $0x8] sm:$0xff]
    %v927 = vld [vmem:[%s924 + $0x10] sm:$0xff]
    %v928 = vld [vmem:[%s924 + $0x18] sm:$0xff]
    %v929 = vld [vmem:[%s924 + $0x20] sm:$0xff]
    %v930 = vld [vmem:[%s924 + $0x28] sm:$0xff]
    %v931 = vlaneseq
    %v932 = vshrl.u32 %v931, 7
    %v933 = vsub.s32 1, %v932
    %v934 = vrot.slane %v107, %v933
    %v936 = vsel %vm314, %v818, 0
    %v939 = vsel %vm314, %v819, 0
    %941 = vmatprep.subr.mxu0 0.0
    %942 = vmatpush1.msra.mxu0 0.0
    %943 = vmatprep.subr.mxu0 0.0
    %944 = vmatpush1.msra.mxu0 0.0
    %945 = vmatprep.subr.mxu0 0.0
    %946 = vmatpush1.msra.mxu0 0.0
    %947 = vmatprep.subr.mxu0 0.0
    %948 = vmatpush1.msra.mxu0 0.0
    %949 = vmatprep.subr.mxu0 0.0
    %950 = vmatpush1.msra.mxu0 0.0
    %951 = vmatprep.subr.mxu0 0.0
    %952 = vmatpush1.msra.mxu0 0.0
    %953 = vmatprep.subr.mxu0 0.0
    %954 = vmatpush1.msra.mxu0 0.0
    %955 = vmatprep.subr.mxu0 0.0
    %956 = vmatpush1.msra.mxu0 0.0
    %957 = vmatprep.subr.mxu0 0.0
    %958 = vmatpush1.msra.mxu0 0.0
    %959 = vmatprep.subr.mxu0 0.0
    %960 = vmatpush1.msra.mxu0 0.0
    %961 = vmatprep.subr.mxu0 0.0
    %962 = vmatpush1.msra.mxu0 %v930
    %963 = vmatprep.subr.mxu0 0.0
    %964 = vmatpush1.msra.mxu0 %v929
    %965 = vmatprep.subr.mxu0 0.0
    %966 = vmatpush1.msra.mxu0 %v928
    %967 = vmatprep.subr.mxu0 0.0
    %968 = vmatpush1.msra.mxu0 %v927
    %969 = vmatprep.subr.mxu0 0.0
    %970 = vmatpush1.msra.mxu0 %v926
    %971 = vmatprep.subr.mxu0 0.0
    %972 = vmatpush1.msra.mxu0 %v925
    %973 = vmatprep.subr.mxu0 0.0
    %974 = vmatpush2.msra.mxu0 0.0
    %975 = vmatprep.subr.mxu0 0.0
    %976 = vmatpush2.msra.mxu0 0.0
    %977 = vmatprep.subr.mxu0 0.0
    %978 = vmatpush2.msra.mxu0 0.0
    %979 = vmatprep.subr.mxu0 0.0
    %980 = vmatpush2.msra.mxu0 0.0
    %981 = vmatprep.subr.mxu0 0.0
    %982 = vmatpush2.msra.mxu0 0.0
    %983 = vmatprep.subr.mxu0 0.0
    %984 = vmatpush2.msra.mxu0 0.0
    %985 = vmatprep.subr.mxu0 0.0
    %986 = vmatpush2.msra.mxu0 0.0
    %987 = vmatprep.subr.mxu0 0.0
    %988 = vmatpush2.msra.mxu0 0.0
    %989 = vmatprep.subr.mxu0 0.0
    %990 = vmatpush2.msra.mxu0 0.0
    %991 = vmatprep.subr.mxu0 0.0
    %992 = vmatpush2.msra.mxu0 0.0
    %993 = vmatprep.subr.mxu0 0.0
    %994 = vmatpush2.msra.mxu0 0.0
    %995 = vmatprep.subr.mxu0 0.0
    %996 = vmatpush2.msra.mxu0 0.0
    %997 = vmatprep.subr.mxu0 0.0
    %998 = vmatpush2.msra.mxu0 0.0
    %999 = vmatprep.subr.mxu0 0.0
    %1000 = vmatpush2.msra.mxu0 0.0
    %1001 = vmatprep.subr.mxu0 0.0
    %1002 = vmatpush2.msra.mxu0 0.0
    %1003 = vmatprep.subr.mxu0 0.0
    %1004 = vmatpush2.msra.mxu0 0.0
    %1005 = vmatprep.mubr.f32.mxu0 0.0
    %1006 = vmatmul.mubr.f32.gmra.mxu0 %v936
    %v1007 = vpop.f32.mrf.mxu0
    %v1008 = vadd.f32 %v934, %v1007
    %v1009 = vpop.f32.mrf.mxu0
    %1010 = vmatprep.mubr.f32.mxu0 0.0
    %1011 = vmatmul.mubr.f32.gmra.mxu0 %v939
    %v1012 = vpop.f32.mrf.mxu0
    %v1013 = vadd.f32 %v934, %v1012
    %v1014 = vpop.f32.mrf.mxu0
    %1015 = vdwg.mxu0
    %v1016 = vmul.f32 %v1008, 0.5
    %v1017 = vmul.f32 %v1013, 0.5
    %v1018 = vmul.f32 %v1008, 0.70710677
    %v1019 = vmul.f32 %v1013, 0.70710677
    %v1020 = verf.f32.pop %v1018
    %v1021 = verf.f32.pop %v1019
    %v1022 = vadd.f32 %v1020, 1.0
    %v1023 = vadd.f32 %v1021, 1.0
    %v1024 = vmul.f32 %v1016, %v1022
    %v1025 = vmul.f32 %v1017, %v1023
    %v1026 = vadd.f32 %v922, %v1024
    %v1027 = vadd.f32 %v923, %v1025
    %s1028 = scalar_lea.vmem [#allocation8], 336
    %v1029 = vld [vmem:[%s1028] sm:$0xff]
    %v1030 = vld [vmem:[%s1028 + $0x8] sm:$0xff]
    %v1031 = vld [vmem:[%s1028 + $0x10] sm:$0xff]
    %v1032 = vld [vmem:[%s1028 + $0x18] sm:$0xff]
    %v1033 = vld [vmem:[%s1028 + $0x20] sm:$0xff]
    %v1034 = vld [vmem:[%s1028 + $0x28] sm:$0xff]
    %v1035 = vlaneseq
    %v1036 = vshrl.u32 %v1035, 7
    %v1037 = vsub.s32 2, %v1036
    %v1038 = vrot.slane %v107, %v1037
    %v1040 = vsel %vm314, %v1026, 0
    %v1043 = vsel %vm314, %v1027, 0
    %1045 = vmatprep.subr.mxu0 0.0
    %1046 = vmatpush1.msra.mxu0 0.0
    %1047 = vmatprep.subr.mxu0 0.0
    %1048 = vmatpush1.msra.mxu0 0.0
    %1049 = vmatprep.subr.mxu0 0.0
    %1050 = vmatpush1.msra.mxu0 0.0
    %1051 = vmatprep.subr.mxu0 0.0
    %1052 = vmatpush1.msra.mxu0 0.0
    %1053 = vmatprep.subr.mxu0 0.0
    %1054 = vmatpush1.msra.mxu0 0.0
    %1055 = vmatprep.subr.mxu0 0.0
    %1056 = vmatpush1.msra.mxu0 0.0
    %1057 = vmatprep.subr.mxu0 0.0
    %1058 = vmatpush1.msra.mxu0 0.0
    %1059 = vmatprep.subr.mxu0 0.0
    %1060 = vmatpush1.msra.mxu0 0.0
    %1061 = vmatprep.subr.mxu0 0.0
    %1062 = vmatpush1.msra.mxu0 0.0
    %1063 = vmatprep.subr.mxu0 0.0
    %1064 = vmatpush1.msra.mxu0 0.0
    %1065 = vmatprep.subr.mxu0 0.0
    %1066 = vmatpush1.msra.mxu0 %v1034
    %1067 = vmatprep.subr.mxu0 0.0
    %1068 = vmatpush1.msra.mxu0 %v1033
    %1069 = vmatprep.subr.mxu0 0.0
    %1070 = vmatpush1.msra.mxu0 %v1032
    %1071 = vmatprep.subr.mxu0 0.0
    %1072 = vmatpush1.msra.mxu0 %v1031
    %1073 = vmatprep.subr.mxu0 0.0
    %1074 = vmatpush1.msra.mxu0 %v1030
    %1075 = vmatprep.subr.mxu0 0.0
    %1076 = vmatpush1.msra.mxu0 %v1029
    %1077 = vmatprep.subr.mxu0 0.0
    %1078 = vmatpush2.msra.mxu0 0.0
    %1079 = vmatprep.subr.mxu0 0.0
    %1080 = vmatpush2.msra.mxu0 0.0
    %1081 = vmatprep.subr.mxu0 0.0
    %1082 = vmatpush2.msra.mxu0 0.0
    %1083 = vmatprep.subr.mxu0 0.0
    %1084 = vmatpush2.msra.mxu0 0.0
    %1085 = vmatprep.subr.mxu0 0.0
    %1086 = vmatpush2.msra.mxu0 0.0
    %1087 = vmatprep.subr.mxu0 0.0
    %1088 = vmatpush2.msra.mxu0 0.0
    %1089 = vmatprep.subr.mxu0 0.0
    %1090 = vmatpush2.msra.mxu0 0.0
    %1091 = vmatprep.subr.mxu0 0.0
    %1092 = vmatpush2.msra.mxu0 0.0
    %1093 = vmatprep.subr.mxu0 0.0
    %1094 = vmatpush2.msra.mxu0 0.0
    %1095 = vmatprep.subr.mxu0 0.0
    %1096 = vmatpush2.msra.mxu0 0.0
    %1097 = vmatprep.subr.mxu0 0.0
    %1098 = vmatpush2.msra.mxu0 0.0
    %1099 = vmatprep.subr.mxu0 0.0
    %1100 = vmatpush2.msra.mxu0 0.0
    %1101 = vmatprep.subr.mxu0 0.0
    %1102 = vmatpush2.msra.mxu0 0.0
    %1103 = vmatprep.subr.mxu0 0.0
    %1104 = vmatpush2.msra.mxu0 0.0
    %1105 = vmatprep.subr.mxu0 0.0
    %1106 = vmatpush2.msra.mxu0 0.0
    %1107 = vmatprep.subr.mxu0 0.0
    %1108 = vmatpush2.msra.mxu0 0.0
    %1109 = vmatprep.mubr.f32.mxu0 0.0
    %1110 = vmatmul.mubr.f32.gmra.mxu0 %v1040
    %v1111 = vpop.f32.mrf.mxu0
    %v1112 = vadd.f32 %v1038, %v1111
    %v1113 = vpop.f32.mrf.mxu0
    %1114 = vmatprep.mubr.f32.mxu0 0.0
    %1115 = vmatmul.mubr.f32.gmra.mxu0 %v1043
    %v1116 = vpop.f32.mrf.mxu0
    %v1117 = vadd.f32 %v1038, %v1116
    %v1118 = vpop.f32.mrf.mxu0
    %1119 = vdwg.mxu0
    %v1120 = vmul.f32 %v1112, 0.5
    %v1121 = vmul.f32 %v1117, 0.5
    %v1122 = vmul.f32 %v1112, 0.70710677
    %v1123 = vmul.f32 %v1117, 0.70710677
    %v1124 = verf.f32.pop %v1122
    %v1125 = verf.f32.pop %v1123
    %v1126 = vadd.f32 %v1124, 1.0
    %v1127 = vadd.f32 %v1125, 1.0
    %v1128 = vmul.f32 %v1120, %v1126
    %v1129 = vmul.f32 %v1121, %v1127
    %v1130 = vadd.f32 %v1128, %v922
    %v1131 = vadd.f32 %v1129, %v923
    %v1132 = vld [vmem:[#allocation10] sm:$0xff]
    %v1133 = vld [vmem:[#allocation10 + $0x8] sm:$0xff]
    %v1134 = vld [vmem:[#allocation10 + $0x10] sm:$0xff]
    %v1135 = vld [vmem:[#allocation10 + $0x18] sm:$0xff]
    %v1136 = vld [vmem:[#allocation10 + $0x20] sm:$0xff]
    %v1137 = vld [vmem:[#allocation10 + $0x28] sm:$0xff]
    %v1138 = vlaneseq
    %v1139 = vshrl.u32 %v1138, 7
    %v1140 = vsub.s32 2, %v1139
    %v1141 = vrot.slane %v106, %v1140
    %v1143 = vsel %vm314, %v1130, 0
    %v1146 = vsel %vm314, %v1131, 0
    %1148 = vmatprep.subr.mxu0 0.0
    %1149 = vmatpush1.msra.mxu0 0.0
    %1150 = vmatprep.subr.mxu0 0.0
    %1151 = vmatpush1.msra.mxu0 0.0
    %1152 = vmatprep.subr.mxu0 0.0
    %1153 = vmatpush1.msra.mxu0 0.0
    %1154 = vmatprep.subr.mxu0 0.0
    %1155 = vmatpush1.msra.mxu0 0.0
    %1156 = vmatprep.subr.mxu0 0.0
    %1157 = vmatpush1.msra.mxu0 0.0
    %1158 = vmatprep.subr.mxu0 0.0
    %1159 = vmatpush1.msra.mxu0 0.0
    %1160 = vmatprep.subr.mxu0 0.0
    %1161 = vmatpush1.msra.mxu0 0.0
    %1162 = vmatprep.subr.mxu0 0.0
    %1163 = vmatpush1.msra.mxu0 0.0
    %1164 = vmatprep.subr.mxu0 0.0
    %1165 = vmatpush1.msra.mxu0 0.0
    %1166 = vmatprep.subr.mxu0 0.0
    %1167 = vmatpush1.msra.mxu0 0.0
    %1168 = vmatprep.subr.mxu0 0.0
    %1169 = vmatpush1.msra.mxu0 %v1137
    %1170 = vmatprep.subr.mxu0 0.0
    %1171 = vmatpush1.msra.mxu0 %v1136
    %1172 = vmatprep.subr.mxu0 0.0
    %1173 = vmatpush1.msra.mxu0 %v1135
    %1174 = vmatprep.subr.mxu0 0.0
    %1175 = vmatpush1.msra.mxu0 %v1134
    %1176 = vmatprep.subr.mxu0 0.0
    %1177 = vmatpush1.msra.mxu0 %v1133
    %1178 = vmatprep.subr.mxu0 0.0
    %1179 = vmatpush1.msra.mxu0 %v1132
    %1180 = vmatprep.subr.mxu0 0.0
    %1181 = vmatpush2.msra.mxu0 0.0
    %1182 = vmatprep.subr.mxu0 0.0
    %1183 = vmatpush2.msra.mxu0 0.0
    %1184 = vmatprep.subr.mxu0 0.0
    %1185 = vmatpush2.msra.mxu0 0.0
    %1186 = vmatprep.subr.mxu0 0.0
    %1187 = vmatpush2.msra.mxu0 0.0
    %1188 = vmatprep.subr.mxu0 0.0
    %1189 = vmatpush2.msra.mxu0 0.0
    %1190 = vmatprep.subr.mxu0 0.0
    %1191 = vmatpush2.msra.mxu0 0.0
    %1192 = vmatprep.subr.mxu0 0.0
    %1193 = vmatpush2.msra.mxu0 0.0
    %1194 = vmatprep.subr.mxu0 0.0
    %1195 = vmatpush2.msra.mxu0 0.0
    %1196 = vmatprep.subr.mxu0 0.0
    %1197 = vmatpush2.msra.mxu0 0.0
    %1198 = vmatprep.subr.mxu0 0.0
    %1199 = vmatpush2.msra.mxu0 0.0
    %1200 = vmatprep.subr.mxu0 0.0
    %1201 = vmatpush2.msra.mxu0 0.0
    %1202 = vmatprep.subr.mxu0 0.0
    %1203 = vmatpush2.msra.mxu0 0.0
    %1204 = vmatprep.subr.mxu0 0.0
    %1205 = vmatpush2.msra.mxu0 0.0
    %1206 = vmatprep.subr.mxu0 0.0
    %1207 = vmatpush2.msra.mxu0 0.0
    %1208 = vmatprep.subr.mxu0 0.0
    %1209 = vmatpush2.msra.mxu0 0.0
    %1210 = vmatprep.subr.mxu0 0.0
    %1211 = vmatpush2.msra.mxu0 0.0
    %1212 = vmatprep.mubr.f32.mxu0 0.0
    %1213 = vmatmul.mubr.f32.gmra.mxu0 %v1143
    %v1214 = vpop.f32.mrf.mxu0
    %v1215 = vadd.f32 %v1141, %v1214
    %v1216 = vpop.f32.mrf.mxu0
    %1217 = vmatprep.mubr.f32.mxu0 0.0
    %1218 = vmatmul.mubr.f32.gmra.mxu0 %v1146
    %v1219 = vpop.f32.mrf.mxu0
    %v1220 = vadd.f32 %v1141, %v1219
    %v1221 = vpop.f32.mrf.mxu0
    %1222 = vdwg.mxu0
    %1223 = vst [vmem:[#allocation13] sm:$0xff] %v1215
    %1224 = vst [vmem:[#allocation13 + $0x8] sm:$0xff] %v1220
    // Predicated region
    $region50: #{tpu_custom_call.1} parent=1 // pred_check
      _
    $region51: #{tpu_custom_call.1} parent=1 // pred_check_branch
      %1226 = sbr.rel (0) target = $region53
    $region52: #{tpu_custom_call.1} parent=1 // pred_region
      %s1228 = ssub.s32 256, 256
      %1229 = vsyncadd [#allocation4], %s1228
      %s1230 = sshll.u32 [#allocation13], 4
      %s1231 = int_to_ptr.vmem [resolvable:$true] %s1230
      %1236 = dma.vmem_to_hbm [thread:$0]  %s1231, 256, %s6, [#allocation4], 128, 128, 8
    $region53: #{tpu_custom_call.1} parent=1 // pred_fallthru
      _
    // Predicated region
    $region54: #{tpu_custom_call.1} parent=1 // pred_check
      _
    $region55: #{tpu_custom_call.1} parent=1 // pred_check_branch
      %1238 = sbr.rel (0) target = $region57
    $region56: #{tpu_custom_call.1} parent=1 // pred_region
      %1239 = dma.done [#allocation4], 256
    $region57: #{tpu_custom_call.1} parent=1 // pred_fallthru
      _
    %1240 = vsyncpa [#allocation3], 1
    %1241 = vsyncpa [#allocation6], 1
    %1242 = vsyncpa [#allocation9], 1
    %1243 = vsyncpa [#allocation12], 1
    %1244 = vsyncpa [#allocation4], 1

</llo_original>
